<compile_context>
chip_gen: v6e
topology: v6e:2x2x1
jax: 0.10.0
libtpu: 0.0.40
codegen_flags: <defaults>
</compile_context>

<pallas_src>
import functools

import jax
import jax.numpy as jnp
from jax.experimental import pallas as pl
from jax.experimental.pallas import tpu as pltpu


def _round_up(x, m):
    return ((x + m - 1) // m) * m


def _attn_sizes(Hc, Wc):
    Hq, Wq = Hc + 1, Wc + 1
    Hd, Wd = Hc + 2, Wc + 2
    Kp = _round_up(Hq * Wq + 1, 128)          # K lanes (phase planes), zero-padded
    Sa = Hd * Wd                              # valid output lanes (padded phase planes)
    TN = min(512, _round_up(Sa, 128))         # N tile (lane-dense; bounds VMEM on v7x)
    Sa_pad = _round_up(Sa, TN)
    return Kp, Sa, TN, Sa_pad


def _conv_sizes(H, W):
    Wp = W + 2
    Ns = H * Wp                               # "wide" output domain (2 junk cols / row)
    NT = min(512, _round_up(Ns, 128))         # in-kernel lane chunk (reg-resident acc)
    Ns_pad = _round_up(Ns, NT)                # lane-dense output width
    Sx = _round_up(2 * Wp + 2 + Ns_pad, 128)  # padded input lanes (covers all tap reads)
    return Wp, Ns, NT, Ns_pad, Sx


# -----------------------------------------------------------------------------
# Kernel 1: fused attention reconstruction + col2im fold, as ONE matmul.
#           (fold + 0.25 scale are pre-baked into A2 in the wrapper)
# -----------------------------------------------------------------------------
def _attn_matmul_kernel(bgf_ref, a2_ref, out_ref):
    out_ref[0] = jnp.dot(bgf_ref[0], a2_ref[0],
                         preferred_element_type=jnp.float32).astype(out_ref.dtype)


def attn_reconstruct(bgph, a2, TN, out_dtype):
    B, C4, Kp = bgph.shape
    _, _, Sa_pad = a2.shape
    n_tiles = Sa_pad // TN
    return pl.pallas_call(
        _attn_matmul_kernel,
        out_shape=jax.ShapeDtypeStruct((B, C4, Sa_pad), out_dtype),
        grid=(B, n_tiles),
        in_specs=[
            pl.BlockSpec((1, C4, Kp), lambda b, j: (b, 0, 0)),   # small LHS, reused over j
            pl.BlockSpec((1, Kp, TN), lambda b, j: (b, 0, j)),   # streamed N tiles of A2
        ],
        out_specs=pl.BlockSpec((1, C4, TN), lambda b, j: (b, 0, j)),
        compiler_params=pltpu.CompilerParams(
            dimension_semantics=("parallel", "parallel"),
            vmem_limit_bytes=32 * 1024 * 1024),
    )(bgph, a2)


# -----------------------------------------------------------------------------
# Kernel 2: 3x3 reflect-pad conv as 9 tap matmuls (K=2C, bg/ACL fused) + bias
#           + ReLU + exact-f32 residual; register accumulation, lane-dense out.
# -----------------------------------------------------------------------------
def _conv_tap_kernel(Wp, NT, n_chunks, xin_ref, res_ref, w_ref, b_ref, out_ref):
    bias = b_ref[...]                                        # (C, 1) f32
    for j in range(n_chunks):                                # static unroll
        base = j * NT
        acc = None
        for dy in range(3):
            for dx in range(3):
                off = base + dy * Wp + dx
                t = jnp.dot(w_ref[dy * 3 + dx],              # (C, 2C) tap weights
                            xin_ref[0, :, off:off + NT],     # (2C, NT) shifted lane slice
                            preferred_element_type=jnp.float32)
                acc = t if acc is None else acc + t
        y = jnp.maximum(acc + bias, 0.0) + res_ref[0, :, base:base + NT]
        out_ref[0, :, base:base + NT] = y                    # 128-aligned store


def conv3x3_relu_residual(xin, res, wt, bias2, Wp, NT, Ns_pad):
    B, C2, Sx = xin.shape
    C = C2 // 2
    n_chunks = Ns_pad // NT
    kernel = functools.partial(_conv_tap_kernel, Wp, NT, n_chunks)
    return pl.pallas_call(
        kernel,
        out_shape=jax.ShapeDtypeStruct((B, C, Ns_pad), jnp.float32),
        grid=(B,),
        in_specs=[
            pl.BlockSpec((1, C2, Sx), lambda b: (b, 0, 0)),
            pl.BlockSpec((1, C, Ns_pad), lambda b: (b, 0, 0)),
            pl.BlockSpec((9, C, 2 * C), lambda b: (0, 0, 0)),   # VMEM-resident weights
            pl.BlockSpec((C, 1), lambda b: (0, 0)),             # VMEM-resident bias
        ],
        out_specs=pl.BlockSpec((1, C, Ns_pad), lambda b: (b, 0, 0)),
        compiler_params=pltpu.CompilerParams(
            dimension_semantics=("parallel",),
            vmem_limit_bytes=32 * 1024 * 1024),
    )(xin, res, wt, bias2)


# -----------------------------------------------------------------------------
# Hoisted re-layouts
# -----------------------------------------------------------------------------
def _prep_att(att, cdtype):
    # att: (B, L, Hc, Wc), L = Hc*Wc (post-softmax attention scores).
    # Build A2 so kernel 1 is a single matmul:
    #   out_phase[c4, s] = sum_p bg_phase[c4, p] * A2[p, s]
    #   A2[p, s] = 0.25 * sum_{di,dj in {0,1}} attw[p - di*Wq - dj, s - di*Wd - dj]
    # i.e. the conv_transpose 4x4/stride-2 tap structure AND the fold are
    # folded into the (batch-wise, block-invariant) attention matrix; the 0.25
    # scale (exact power of two) is folded in too.
    B, L, Hc, Wc = att.shape
    assert L == Hc * Wc
    Wq, Wd = Wc + 1, Wc + 2
    L_w, M_w = Hc * Wq, Hc * Wd
    Kp, _, _, Sa_pad = _attn_sizes(Hc, Wc)
    att5 = att.reshape(B, Hc, Wc, Hc, Wc)                    # [b, py, px, qy, qx]
    attw = jnp.pad(att5, ((0, 0), (0, 0), (0, 1), (0, 0), (0, 2)))
    attw = attw.reshape(B, L_w, M_w) * 0.25
    a2 = jnp.zeros((B, Kp, Sa_pad), dtype=att.dtype)
    for di in range(2):
        for dj in range(2):
            r0 = di * Wq + dj
            c0 = di * Wd + dj
            a2 = a2.at[:, r0:r0 + L_w, c0:c0 + M_w].add(attw)
    return a2.astype(cdtype)


def _prep_params(params, C, cdtype):
    prepped = []
    for (w, b) in params:                                    # w: (C, 2C, 3, 3)
        wt = w.transpose(2, 3, 0, 1).reshape(9, C, 2 * C).astype(cdtype)
        prepped.append((wt, b.reshape(C, 1).astype(jnp.float32)))
    return prepped


# -----------------------------------------------------------------------------
# One HarmonyRecBlock (rate=2, stride=1, kernel=4) forward
# -----------------------------------------------------------------------------
def harmony_rec_block_forward(bg, a2, TN, wt, bias2, cdtype):
    B, C, H, W = bg.shape
    assert H % 2 == 0 and W % 2 == 0
    Hc, Wc = H // 2, W // 2
    Hq, Wq = Hc + 1, Wc + 1
    Hd, Wd = Hc + 2, Wc + 2
    Kp, Sa, _, _ = _attn_sizes(Hc, Wc)
    Wp, Ns, NT, Ns_pad, Sx = _conv_sizes(H, W)
    Hp = H + 2

    # ---- kernel 1: space-to-depth of the zero 'same'-padded bg -> K axis ----
    bg_pad = jnp.pad(bg, ((0, 0), (0, 0), (1, 1), (1, 1)))
    bg6 = bg_pad.reshape(B, C, Hq, 2, Wq, 2)
    bgph = bg6.transpose(0, 3, 5, 1, 2, 4).reshape(B, 4 * C, Hq * Wq)
    bgph = jnp.pad(bgph, ((0, 0), (0, 0), (0, Kp - Hq * Wq))).astype(cdtype)

    out1 = attn_reconstruct(bgph, a2, TN, cdtype)            # (B, 4C, Sa_pad)

    # de-phase + crop -> ACL (single fused XLA transpose pass)
    acc6 = out1[:, :, :Sa].reshape(B, 2, 2, C, Hd, Wd).transpose(0, 3, 4, 1, 5, 2)
    ACL = acc6.reshape(B, C, 2 * Hd, 2 * Wd)[:, :, 1:H + 1, 1:W + 1]

    # ---- kernel 2: reflect-padded, channel-stacked, lane-flat input ----------
    bgp = jnp.pad(bg, ((0, 0), (0, 0), (1, 1), (1, 1)), mode="reflect")
    aclp = jnp.pad(ACL, ((0, 0), (0, 0), (1, 1), (1, 1)), mode="reflect")
    xin = jnp.concatenate([bgp.astype(cdtype), aclp.astype(cdtype)], axis=1)
    xin = jnp.pad(xin.reshape(B, 2 * C, Hp * Wp),
                  ((0, 0), (0, 0), (0, Sx - Hp * Wp)))
    # exact-f32 residual, pre-laid-out in the (C, H*Wp) "wide" output stride
    res = jnp.pad(bg, ((0, 0), (0, 0), (0, 0), (0, Wp - W))).reshape(B, C, Ns)
    res = jnp.pad(res, ((0, 0), (0, 0), (0, Ns_pad - Ns)))

    out_wide = conv3x3_relu_residual(xin, res, wt, bias2, Wp, NT, Ns_pad)
    # drop the slack lanes + the 2 over-computed columns per row.
    return out_wide[:, :, :Ns].reshape(B, C, H, Wp)[:, :, :, :W]


def harmony_rec_blocks_forward(x, att, params, cdtype=jnp.bfloat16):
    B, C, H, W = x.shape
    Hc, Wc = H // 2, W // 2
    _, _, TN, _ = _attn_sizes(Hc, Wc)
    a2 = _prep_att(att, cdtype)                 # hoisted: shared by every block
    for (wt, b2) in _prep_params(params, C, cdtype):
        x = harmony_rec_block_forward(x, a2, TN, wt, b2, cdtype)
    return x


# -----------------------------------------------------------------------------
# Pure-JAX f32 reference (matches the PyTorch module semantics)
# -----------------------------------------------------------------------------
def reference_forward(x, att, params):
    def block(bg, w, b):
        B, C, H, W = bg.shape
        Hc, Wc = H // 2, W // 2
        L = Hc * Wc
        bg_pad = jnp.pad(bg, ((0, 0), (0, 0), (1, 1), (1, 1)))
        patches = jnp.stack([bg_pad[:, :, i:i + 2 * Hc:2, j:j + 2 * Wc:2]
                             for i in range(4) for j in range(4)], axis=2)
        patches = patches.reshape(B, C * 16, L)
        cols = 0.25 * jnp.einsum("bkl,blm->bkm", patches, att.reshape(B, L, L))
        c5 = cols.reshape(B, C, 4, 4, Hc, Wc)
        acc = jnp.zeros((B, C, H + 2, W + 2), dtype=bg.dtype)
        for i in range(4):
            for j in range(4):
                acc = acc.at[:, :, i:i + 2 * Hc:2, j:j + 2 * Wc:2].add(c5[:, :, i, j])
        ACL = acc[:, :, 1:H + 1, 1:W + 1]
        con1 = jnp.concatenate([bg, ACL], axis=1)
        con1_pad = jnp.pad(con1, ((0, 0), (0, 0), (1, 1), (1, 1)), mode="reflect")
        y = jax.lax.conv_general_dilated(
            con1_pad, w, window_strides=(1, 1), padding="VALID",
            dimension_numbers=("NCHW", "OIHW", "NCHW"))
        y = jax.nn.relu(y + b.reshape(1, C, 1, 1))
        return y + bg

    for (w, b) in params:
        x = block(x, w, b)
    return x


if __name__ == "__main__":
    B, C, H, W = 2, 8, 16, 16
    num_blocks = 2
    Hc, Wc = H // 2, W // 2
    L = Hc * Wc

    key = jax.random.PRNGKey(0)
    k_x, k_a, k_p = jax.random.split(key, 3)
    x = jax.random.normal(k_x, (B, C, H, W), dtype=jnp.float32)
    # attScore: attention over L = (H/2)*(W/2) source patches, spatial (H/2, W/2)
    att = jax.nn.softmax(
        jax.random.normal(k_a, (B, L, Hc, Wc), dtype=jnp.float32), axis=1)

    params = []
    for _ in range(num_blocks):
        k_p, kw, kb = jax.random.split(k_p, 3)
        w = jax.random.normal(kw, (C, 2 * C, 3, 3), dtype=jnp.float32) * 0.05
        b = jax.random.normal(kb, (C,), dtype=jnp.float32) * 0.01
        params.append((w, b))

    fwd_bf16 = jax.jit(functools.partial(harmony_rec_blocks_forward,
                                         cdtype=jnp.bfloat16))
    fwd_f32 = jax.jit(functools.partial(harmony_rec_blocks_forward,
                                        cdtype=jnp.float32))

    out = jax.block_until_ready(fwd_bf16(x, att, params))
    assert out.shape == (B, C, H, W) and out.dtype == jnp.float32

    # correctness: near-exact check in f32, tolerance check for the bf16 path
    ref = jax.block_until_ready(jax.jit(reference_forward)(x, att, params))
    out_f32 = jax.block_until_ready(fwd_f32(x, att, params))
    err_f32 = float(jnp.max(jnp.abs(out_f32 - ref)))
    err_bf16 = float(jnp.max(jnp.abs(out - ref)))
    rel_bf16 = err_bf16 / max(float(jnp.max(jnp.abs(ref))), 1e-6)
    assert err_f32 < 0.15, f"f32 path mismatch: {err_f32}"
    assert err_bf16 < 0.5, f"bf16 path mismatch: abs={err_bf16} rel={rel_bf16}"

    print("KERNEL_OK")
</pallas_src>

<mosaic_0001>
module attributes {stable_mosaic.version = 11 : i64} {
  func.func @_attn_matmul_kernel(%arg0: i32, %arg1: i32, %arg2: memref<1x32x128xbf16, #tpu.memory_space<vmem>>, %arg3: memref<1x128x128xbf16, #tpu.memory_space<vmem>>, %arg4: memref<1x32x128xbf16, #tpu.memory_space<vmem>>) attributes {dimension_semantics = [#tpu.dimension_semantics<parallel>, #tpu.dimension_semantics<parallel>], iteration_bounds = array<i64: 2, 1>, scalar_prefetch = 0 : i64, scratch_operands = 0 : i64, tpu.core_type = #tpu.core_type<tc>, window_params = [{transform_indices = @transform_0, window_bounds = array<i64: 1, 32, 128>}, {transform_indices = @transform_1, window_bounds = array<i64: 1, 128, 128>}, {transform_indices = @transform_2, window_bounds = array<i64: 1, 32, 128>}]} {
    %c0 = arith.constant 0 : index
    %c0_0 = arith.constant 0 : index
    %c0_1 = arith.constant 0 : index
    %0 = vector.load %arg2[%c0, %c0_0, %c0_1] : memref<1x32x128xbf16, #tpu.memory_space<vmem>>, vector<1x32x128xbf16>
    %1 = vector.shape_cast %0 : vector<1x32x128xbf16> to vector<32x128xbf16>
    %c0_2 = arith.constant 0 : index
    %c0_3 = arith.constant 0 : index
    %c0_4 = arith.constant 0 : index
    %2 = vector.load %arg3[%c0_2, %c0_3, %c0_4] : memref<1x128x128xbf16, #tpu.memory_space<vmem>>, vector<1x128x128xbf16>
    %3 = vector.shape_cast %2 : vector<1x128x128xbf16> to vector<128x128xbf16>
    %cst = arith.constant dense<0.000000e+00> : vector<32x128xf32>
    %4 = tpu.matmul %1, %3, %cst {dimension_numbers = #tpu.dot_dimension_numbers<[1], [0], [0], [1], [0, 0, 1, 1], [], []>} : vector<32x128xbf16>, vector<128x128xbf16>, vector<32x128xf32> -> vector<32x128xf32>
    %5 = arith.truncf %4 : vector<32x128xf32> to vector<32x128xbf16>
    %c0_5 = arith.constant 0 : index
    %c0_6 = arith.constant 0 : index
    %c0_7 = arith.constant 0 : index
    %6 = vector.load %arg4[%c0_5, %c0_6, %c0_7] : memref<1x32x128xbf16, #tpu.memory_space<vmem>>, vector<1x32x128xbf16>
    %7 = vector.shape_cast %6 : vector<1x32x128xbf16> to vector<32x128xbf16>
    %8 = vector.shape_cast %5 : vector<32x128xbf16> to vector<1x32x128xbf16>
    tpu.vector_store %arg4[%c0_5, %c0_6, %c0_7], %8 {strides = array<i32>} : memref<1x32x128xbf16, #tpu.memory_space<vmem>>, vector<1x32x128xbf16>,
    return
  }
  func.func @transform_0(%arg0: i32, %arg1: i32) -> (i32, i32, i32) {
    %c0_i32 = arith.constant 0 : i32
    %c0_i32_0 = arith.constant 0 : i32
    %c0_i32_1 = arith.constant 0 : i32
    return %arg0, %c0_i32, %c0_i32_0 : i32, i32, i32
  }
  func.func @transform_1(%arg0: i32, %arg1: i32) -> (i32, i32, i32) {
    %c0_i32 = arith.constant 0 : i32
    %c0_i32_0 = arith.constant 0 : i32
    return %arg0, %c0_i32, %arg1 : i32, i32, i32
  }
  func.func @transform_2(%arg0: i32, %arg1: i32) -> (i32, i32, i32) {
    %c0_i32 = arith.constant 0 : i32
    %c0_i32_0 = arith.constant 0 : i32
    return %arg0, %c0_i32, %arg1 : i32, i32, i32
  }
}

module attributes {stable_mosaic.version = 11 : i64} {
  func.func @_conv_tap_kernel(%arg0: i32, %arg1: memref<1x16x512xbf16, #tpu.memory_space<vmem>>, %arg2: memref<1x8x384xf32, #tpu.memory_space<vmem>>, %arg3: memref<9x8x16xbf16, #tpu.memory_space<vmem>>, %arg4: memref<8x1xf32, #tpu.memory_space<vmem>>, %arg5: memref<1x8x384xf32, #tpu.memory_space<vmem>>) attributes {dimension_semantics = [#tpu.dimension_semantics<parallel>], iteration_bounds = array<i64: 2>, scalar_prefetch = 0 : i64, scratch_operands = 0 : i64, tpu.core_type = #tpu.core_type<tc>, window_params = [{transform_indices = @transform_0, window_bounds = array<i64: 1, 16, 512>}, {transform_indices = @transform_1, window_bounds = array<i64: 1, 8, 384>}, {pipeline_mode = #tpu.pipeline_mode<synchronous>, transform_indices = @transform_2, window_bounds = array<i64: 9, 8, 16>}, {pipeline_mode = #tpu.pipeline_mode<synchronous>, transform_indices = @transform_3, window_bounds = array<i64: 8, 1>}, {transform_indices = @transform_4, window_bounds = array<i64: 1, 8, 384>}]} {
    %c0 = arith.constant 0 : index
    %c0_0 = arith.constant 0 : index
    %0 = vector.load %arg4[%c0, %c0_0] : memref<8x1xf32, #tpu.memory_space<vmem>>, vector<8x1xf32>
    %c0_1 = arith.constant 0 : index
    %c0_2 = arith.constant 0 : index
    %c0_3 = arith.constant 0 : index
    %1 = vector.load %arg3[%c0_1, %c0_2, %c0_3] : memref<9x8x16xbf16, #tpu.memory_space<vmem>>, vector<1x8x16xbf16>
    %2 = vector.shape_cast %1 : vector<1x8x16xbf16> to vector<8x16xbf16>
    %c0_4 = arith.constant 0 : index
    %c0_5 = arith.constant 0 : index
    %c0_6 = arith.constant 0 : index
    %3 = vector.load %arg1[%c0_4, %c0_5, %c0_6] : memref<1x16x512xbf16, #tpu.memory_space<vmem>>, vector<1x16x384xbf16>
    %4 = vector.shape_cast %3 : vector<1x16x384xbf16> to vector<16x384xbf16>
    %cst = arith.constant dense<0.000000e+00> : vector<8x384xf32>
    %5 = tpu.matmul %2, %4, %cst {dimension_numbers = #tpu.dot_dimension_numbers<[1], [0], [0], [1], [0, 0, 1, 1], [], []>} : vector<8x16xbf16>, vector<16x384xbf16>, vector<8x384xf32> -> vector<8x384xf32>
    %c1 = arith.constant 1 : index
    %c0_7 = arith.constant 0 : index
    %c0_8 = arith.constant 0 : index
    %6 = vector.load %arg3[%c1, %c0_7, %c0_8] : memref<9x8x16xbf16, #tpu.memory_space<vmem>>, vector<1x8x16xbf16>
    %7 = vector.shape_cast %6 : vector<1x8x16xbf16> to vector<8x16xbf16>
    %c0_9 = arith.constant 0 : index
    %c0_10 = arith.constant 0 : index
    %c1_11 = arith.constant 1 : index
    %8 = vector.load %arg1[%c0_9, %c0_10, %c1_11] : memref<1x16x512xbf16, #tpu.memory_space<vmem>>, vector<1x16x384xbf16>
    %9 = vector.shape_cast %8 : vector<1x16x384xbf16> to vector<16x384xbf16>
    %cst_12 = arith.constant dense<0.000000e+00> : vector<8x384xf32>
    %10 = tpu.matmul %7, %9, %cst_12 {dimension_numbers = #tpu.dot_dimension_numbers<[1], [0], [0], [1], [0, 0, 1, 1], [], []>} : vector<8x16xbf16>, vector<16x384xbf16>, vector<8x384xf32> -> vector<8x384xf32>
    %11 = arith.addf %5, %10 : vector<8x384xf32>
    %c2 = arith.constant 2 : index
    %c0_13 = arith.constant 0 : index
    %c0_14 = arith.constant 0 : index
    %12 = vector.load %arg3[%c2, %c0_13, %c0_14] : memref<9x8x16xbf16, #tpu.memory_space<vmem>>, vector<1x8x16xbf16>
    %13 = vector.shape_cast %12 : vector<1x8x16xbf16> to vector<8x16xbf16>
    %c0_15 = arith.constant 0 : index
    %c0_16 = arith.constant 0 : index
    %c2_17 = arith.constant 2 : index
    %14 = vector.load %arg1[%c0_15, %c0_16, %c2_17] : memref<1x16x512xbf16, #tpu.memory_space<vmem>>, vector<1x16x384xbf16>
    %15 = vector.shape_cast %14 : vector<1x16x384xbf16> to vector<16x384xbf16>
    %cst_18 = arith.constant dense<0.000000e+00> : vector<8x384xf32>
    %16 = tpu.matmul %13, %15, %cst_18 {dimension_numbers = #tpu.dot_dimension_numbers<[1], [0], [0], [1], [0, 0, 1, 1], [], []>} : vector<8x16xbf16>, vector<16x384xbf16>, vector<8x384xf32> -> vector<8x384xf32>
    %17 = arith.addf %11, %16 : vector<8x384xf32>
    %c3 = arith.constant 3 : index
    %c0_19 = arith.constant 0 : index
    %c0_20 = arith.constant 0 : index
    %18 = vector.load %arg3[%c3, %c0_19, %c0_20] : memref<9x8x16xbf16, #tpu.memory_space<vmem>>, vector<1x8x16xbf16>
    %19 = vector.shape_cast %18 : vector<1x8x16xbf16> to vector<8x16xbf16>
    %c0_21 = arith.constant 0 : index
    %c0_22 = arith.constant 0 : index
    %c18 = arith.constant 18 : index
    %20 = vector.load %arg1[%c0_21, %c0_22, %c18] : memref<1x16x512xbf16, #tpu.memory_space<vmem>>, vector<1x16x384xbf16>
    %21 = vector.shape_cast %20 : vector<1x16x384xbf16> to vector<16x384xbf16>
    %cst_23 = arith.constant dense<0.000000e+00> : vector<8x384xf32>
    %22 = tpu.matmul %19, %21, %cst_23 {dimension_numbers = #tpu.dot_dimension_numbers<[1], [0], [0], [1], [0, 0, 1, 1], [], []>} : vector<8x16xbf16>, vector<16x384xbf16>, vector<8x384xf32> -> vector<8x384xf32>
    %23 = arith.addf %17, %22 : vector<8x384xf32>
    %c4 = arith.constant 4 : index
    %c0_24 = arith.constant 0 : index
    %c0_25 = arith.constant 0 : index
    %24 = vector.load %arg3[%c4, %c0_24, %c0_25] : memref<9x8x16xbf16, #tpu.memory_space<vmem>>, vector<1x8x16xbf16>
    %25 = vector.shape_cast %24 : vector<1x8x16xbf16> to vector<8x16xbf16>
    %c0_26 = arith.constant 0 : index
    %c0_27 = arith.constant 0 : index
    %c19 = arith.constant 19 : index
    %26 = vector.load %arg1[%c0_26, %c0_27, %c19] : memref<1x16x512xbf16, #tpu.memory_space<vmem>>, vector<1x16x384xbf16>
    %27 = vector.shape_cast %26 : vector<1x16x384xbf16> to vector<16x384xbf16>
    %cst_28 = arith.constant dense<0.000000e+00> : vector<8x384xf32>
    %28 = tpu.matmul %25, %27, %cst_28 {dimension_numbers = #tpu.dot_dimension_numbers<[1], [0], [0], [1], [0, 0, 1, 1], [], []>} : vector<8x16xbf16>, vector<16x384xbf16>, vector<8x384xf32> -> vector<8x384xf32>
    %29 = arith.addf %23, %28 : vector<8x384xf32>
    %c5 = arith.constant 5 : index
    %c0_29 = arith.constant 0 : index
    %c0_30 = arith.constant 0 : index
    %30 = vector.load %arg3[%c5, %c0_29, %c0_30] : memref<9x8x16xbf16, #tpu.memory_space<vmem>>, vector<1x8x16xbf16>
    %31 = vector.shape_cast %30 : vector<1x8x16xbf16> to vector<8x16xbf16>
    %c0_31 = arith.constant 0 : index
    %c0_32 = arith.constant 0 : index
    %c20 = arith.constant 20 : index
    %32 = vector.load %arg1[%c0_31, %c0_32, %c20] : memref<1x16x512xbf16, #tpu.memory_space<vmem>>, vector<1x16x384xbf16>
    %33 = vector.shape_cast %32 : vector<1x16x384xbf16> to vector<16x384xbf16>
    %cst_33 = arith.constant dense<0.000000e+00> : vector<8x384xf32>
    %34 = tpu.matmul %31, %33, %cst_33 {dimension_numbers = #tpu.dot_dimension_numbers<[1], [0], [0], [1], [0, 0, 1, 1], [], []>} : vector<8x16xbf16>, vector<16x384xbf16>, vector<8x384xf32> -> vector<8x384xf32>
    %35 = arith.addf %29, %34 : vector<8x384xf32>
    %c6 = arith.constant 6 : index
    %c0_34 = arith.constant 0 : index
    %c0_35 = arith.constant 0 : index
    %36 = vector.load %arg3[%c6, %c0_34, %c0_35] : memref<9x8x16xbf16, #tpu.memory_space<vmem>>, vector<1x8x16xbf16>
    %37 = vector.shape_cast %36 : vector<1x8x16xbf16> to vector<8x16xbf16>
    %c0_36 = arith.constant 0 : index
    %c0_37 = arith.constant 0 : index
    %c36 = arith.constant 36 : index
    %38 = vector.load %arg1[%c0_36, %c0_37, %c36] : memref<1x16x512xbf16, #tpu.memory_space<vmem>>, vector<1x16x384xbf16>
    %39 = vector.shape_cast %38 : vector<1x16x384xbf16> to vector<16x384xbf16>
    %cst_38 = arith.constant dense<0.000000e+00> : vector<8x384xf32>
    %40 = tpu.matmul %37, %39, %cst_38 {dimension_numbers = #tpu.dot_dimension_numbers<[1], [0], [0], [1], [0, 0, 1, 1], [], []>} : vector<8x16xbf16>, vector<16x384xbf16>, vector<8x384xf32> -> vector<8x384xf32>
    %41 = arith.addf %35, %40 : vector<8x384xf32>
    %c7 = arith.constant 7 : index
    %c0_39 = arith.constant 0 : index
    %c0_40 = arith.constant 0 : index
    %42 = vector.load %arg3[%c7, %c0_39, %c0_40] : memref<9x8x16xbf16, #tpu.memory_space<vmem>>, vector<1x8x16xbf16>
    %43 = vector.shape_cast %42 : vector<1x8x16xbf16> to vector<8x16xbf16>
    %c0_41 = arith.constant 0 : index
    %c0_42 = arith.constant 0 : index
    %c37 = arith.constant 37 : index
    %44 = vector.load %arg1[%c0_41, %c0_42, %c37] : memref<1x16x512xbf16, #tpu.memory_space<vmem>>, vector<1x16x384xbf16>
    %45 = vector.shape_cast %44 : vector<1x16x384xbf16> to vector<16x384xbf16>
    %cst_43 = arith.constant dense<0.000000e+00> : vector<8x384xf32>
    %46 = tpu.matmul %43, %45, %cst_43 {dimension_numbers = #tpu.dot_dimension_numbers<[1], [0], [0], [1], [0, 0, 1, 1], [], []>} : vector<8x16xbf16>, vector<16x384xbf16>, vector<8x384xf32> -> vector<8x384xf32>
    %47 = arith.addf %41, %46 : vector<8x384xf32>
    %c8 = arith.constant 8 : index
    %c0_44 = arith.constant 0 : index
    %c0_45 = arith.constant 0 : index
    %48 = vector.load %arg3[%c8, %c0_44, %c0_45] : memref<9x8x16xbf16, #tpu.memory_space<vmem>>, vector<1x8x16xbf16>
    %49 = vector.shape_cast %48 : vector<1x8x16xbf16> to vector<8x16xbf16>
    %c0_46 = arith.constant 0 : index
    %c0_47 = arith.constant 0 : index
    %c38 = arith.constant 38 : index
    %50 = vector.load %arg1[%c0_46, %c0_47, %c38] : memref<1x16x512xbf16, #tpu.memory_space<vmem>>, vector<1x16x384xbf16>
    %51 = vector.shape_cast %50 : vector<1x16x384xbf16> to vector<16x384xbf16>
    %cst_48 = arith.constant dense<0.000000e+00> : vector<8x384xf32>
    %52 = tpu.matmul %49, %51, %cst_48 {dimension_numbers = #tpu.dot_dimension_numbers<[1], [0], [0], [1], [0, 0, 1, 1], [], []>} : vector<8x16xbf16>, vector<16x384xbf16>, vector<8x384xf32> -> vector<8x384xf32>
    %53 = arith.addf %47, %52 : vector<8x384xf32>
    %54 = vector.broadcast %0 : vector<8x1xf32> to vector<8x384xf32>
    %55 = arith.addf %53, %54 : vector<8x384xf32>
    %cst_49 = arith.constant 0.000000e+00 : f32
    %56 = vector.broadcast %cst_49 : f32 to vector<8x384xf32>
    %57 = arith.maximumf %55, %56 : vector<8x384xf32>
    %c0_50 = arith.constant 0 : index
    %c0_51 = arith.constant 0 : index
    %c0_52 = arith.constant 0 : index
    %58 = vector.load %arg2[%c0_50, %c0_51, %c0_52] : memref<1x8x384xf32, #tpu.memory_space<vmem>>, vector<1x8x384xf32>
    %59 = vector.shape_cast %58 : vector<1x8x384xf32> to vector<8x384xf32>
    %60 = arith.addf %57, %59 : vector<8x384xf32>
    %c0_53 = arith.constant 0 : index
    %c0_54 = arith.constant 0 : index
    %c0_55 = arith.constant 0 : index
    %61 = vector.load %arg5[%c0_53, %c0_54, %c0_55] : memref<1x8x384xf32, #tpu.memory_space<vmem>>, vector<1x8x384xf32>
    %62 = vector.shape_cast %61 : vector<1x8x384xf32> to vector<8x384xf32>
    %63 = vector.shape_cast %60 : vector<8x384xf32> to vector<1x8x384xf32>
    tpu.vector_store %arg5[%c0_53, %c0_54, %c0_55], %63 {strides = array<i32>} : memref<1x8x384xf32, #tpu.memory_space<vmem>>, vector<1x8x384xf32>,
    return
  }
  func.func @transform_0(%arg0: i32) -> (i32, i32, i32) {
    %c0_i32 = arith.constant 0 : i32
    %c0_i32_0 = arith.constant 0 : i32
    %c0_i32_1 = arith.constant 0 : i32
    return %arg0, %c0_i32, %c0_i32_0 : i32, i32, i32
  }
  func.func @transform_1(%arg0: i32) -> (i32, i32, i32) {
    %c0_i32 = arith.constant 0 : i32
    %c0_i32_0 = arith.constant 0 : i32
    %c0_i32_1 = arith.constant 0 : i32
    return %arg0, %c0_i32, %c0_i32_0 : i32, i32, i32
  }
  func.func @transform_2(%arg0: i32) -> (i32, i32, i32) {
    %c0_i32 = arith.constant 0 : i32
    %c0_i32_0 = arith.constant 0 : i32
    %c0_i32_1 = arith.constant 0 : i32
    %c0_i32_2 = arith.constant 0 : i32
    return %c0_i32, %c0_i32_0, %c0_i32_1 : i32, i32, i32
  }
  func.func @transform_3(%arg0: i32) -> (i32, i32) {
    %c0_i32 = arith.constant 0 : i32
    %c0_i32_0 = arith.constant 0 : i32
    %c0_i32_1 = arith.constant 0 : i32
    return %c0_i32, %c0_i32_0 : i32, i32
  }
  func.func @transform_4(%arg0: i32) -> (i32, i32, i32) {
    %c0_i32 = arith.constant 0 : i32
    %c0_i32_0 = arith.constant 0 : i32
    %c0_i32_1 = arith.constant 0 : i32
    return %arg0, %c0_i32, %c0_i32_0 : i32, i32, i32
  }
}

</mosaic_0001>

<llo_original>
// kernel: harmony_rec_blocks_forward.4
$region0: #{harmony_rec_blocks_forward.4}
  #allocation0 [shape = 'u32[]', space=smem, size = 0x4, offset = 0x4, fixed_abs, tag = 'smem constant byte address 0x4 - core index']
  #allocation1 [shape = 'u32[144,128]{1,0:T(1,128)}', space=vmem, size = 0x12000, scoped, tag = 'internal scratch']
  %s0 = inlined_call_operand.vmem [shape: bf16[2,32,128], index: 0, kind: input, shape index: {}]
  %s1 = inlined_call_operand.vmem [shape: bf16[2,128,128], index: 1, kind: input, shape index: {}]
  %s2 = inlined_call_operand.vmem [shape: bf16[2,32,128], index: 2, kind: output, shape index: {}]
  %s3 = sld [smem:[#allocation0]]
  $region41: #{harmony_rec_blocks_forward.4} parent=0
    _
  %s5 = ssub.s32 1, %s3
  %s6 = scalar_select 0, %s5, %s3
  loop: start=0, step=1, limit=4
  $region2: #{harmony_rec_blocks_forward.4} parent=0 // loop_pre_header
    _
  $region3: #{harmony_rec_blocks_forward.4} parent=0 // loop_header
    %s8 = sphi 0, %s12
    %p9 = scmp.ge.s32.totalorder %s8, 4
    %s15 = sphi 0, %s27
    %s16 = sphi 0, %s23
    %s17 = sphi 0, %s15
    %s18 = sphi 0, %s16
    %s19 = sphi 0, %s17
    %s20 = sphi 0, %s18
    %s30 = sphi 0, %s32
    %s33 = sphi 0, %s30
    %s34 = sphi 0, %s33
    %s50 = sphi 0, %s34
    %s58 = sphi 0, %s60
    %s61 = sphi 0, %s58
    %s62 = sphi 0, %s61
    %s78 = sphi 0, %s62
    %s86 = sphi 0, %s88
    %s89 = sphi 0, %s86
    %s90 = sphi 0, %s89
    %s106 = sphi 0, %s90
  $region4: #{harmony_rec_blocks_forward.4} parent=0 // loop_header_branch
    %11 = sbr.rel (%p9) target = $region8
  $region5: #{harmony_rec_blocks_forward.4} parent=0 // loop_body
    %s13 = ssub.s32 %s8, 1
    %s14 = ssub.s32 %s8, 2
    %s21 = sadd.s32 1, %s16
    %p22 = scmp.ge.s32.totalorder %s21, 1
    %s23 = scalar_select %p22, 0, %s21
    %s24 = sadd.s32 1, %s15
    %s25 = scalar_select %p22, %s24, %s15
    %p26 = scmp.ge.s32.totalorder %s25, 2
    %s27 = scalar_select %p26, 0, %s25
    %s28 = ssub.s32 %s15, %s27
    %p29 = scmp.eq.s32.totalorder %s28, 0
    %s31 = sadd.s32 %s30, 1
    %s32 = scalar_select %p29, %s30, %s31
    %p35 = pneg %p29
    %p36 = scmp.eq.s32.totalorder %s8, 1
    %p37 = por %p35, %p36
    %p38 = scmp.ne.s32.totalorder %s30, %s33
    %p39 = scmp.eq.s32.totalorder %s8, 0
    %p40 = por %p38, %p39
    %p41 = scmp.ne.s32.totalorder %s30, %s33
    %p42 = scmp.eq.s32.totalorder %s13, 1
    %p43 = por %p41, %p42
    %p44 = scmp.ne.s32.totalorder %s33, %s34
    %p45 = scmp.eq.s32.totalorder %s13, 0
    %p46 = por %p44, %p45
    %p47 = scmp.ne.s32.totalorder %s33, %s34
    %p48 = scmp.eq.s32.totalorder %s14, 1
    %p49 = por %p47, %p48
    %p51 = scmp.ne.s32.totalorder %s34, %s50
    %p52 = scmp.eq.s32.totalorder %s14, 0
    %p53 = por %p51, %p52
    %s54 = ssub.s32 %s15, %s27
    %s55 = ssub.s32 %s16, %s23
    %s56 = sor.u32 %s54, %s55
    %p57 = scmp.eq.s32.totalorder %s56, 0
    %s59 = sadd.s32 %s58, 1
    %s60 = scalar_select %p57, %s58, %s59
    %p63 = pneg %p57
    %p64 = scmp.eq.s32.totalorder %s8, 1
    %p65 = por %p63, %p64
    %p66 = scmp.ne.s32.totalorder %s58, %s61
    %p67 = scmp.eq.s32.totalorder %s8, 0
    %p68 = por %p66, %p67
    %p69 = scmp.ne.s32.totalorder %s58, %s61
    %p70 = scmp.eq.s32.totalorder %s13, 1
    %p71 = por %p69, %p70
    %p72 = scmp.ne.s32.totalorder %s61, %s62
    %p73 = scmp.eq.s32.totalorder %s13, 0
    %p74 = por %p72, %p73
    %p75 = scmp.ne.s32.totalorder %s61, %s62
    %p76 = scmp.eq.s32.totalorder %s14, 1
    %p77 = por %p75, %p76
    %p79 = scmp.ne.s32.totalorder %s62, %s78
    %p80 = scmp.eq.s32.totalorder %s14, 0
    %p81 = por %p79, %p80
    %s82 = ssub.s32 %s15, %s27
    %s83 = ssub.s32 %s16, %s23
    %s84 = sor.u32 %s82, %s83
    %p85 = scmp.eq.s32.totalorder %s84, 0
    %s87 = sadd.s32 %s86, 1
    %s88 = scalar_select %p85, %s86, %s87
    %p91 = pneg %p85
    %p92 = scmp.eq.s32.totalorder %s8, 1
    %p93 = por %p91, %p92
    %p94 = scmp.ne.s32.totalorder %s86, %s89
    %p95 = scmp.eq.s32.totalorder %s8, 0
    %p96 = por %p94, %p95
    %p97 = scmp.ne.s32.totalorder %s86, %s89
    %p98 = scmp.eq.s32.totalorder %s13, 1
    %p99 = por %p97, %p98
    %p100 = scmp.ne.s32.totalorder %s89, %s90
    %p101 = scmp.eq.s32.totalorder %s13, 0
    %p102 = por %p100, %p101
    %p103 = scmp.ne.s32.totalorder %s89, %s90
    %p104 = scmp.eq.s32.totalorder %s14, 1
    %p105 = por %p103, %p104
    %p107 = scmp.ne.s32.totalorder %s90, %s106
    %p108 = scmp.eq.s32.totalorder %s14, 0
    %p109 = por %p107, %p108
    %p110 = scmp.le.s32.totalorder 1, %s8
    %p111 = scmp.lt.s32.totalorder %s8, 3
    %p112 = pnand %p110, %p111
    %p113 = pneg %p112
    // Predicated region
    $region9: #{harmony_rec_blocks_forward.4} parent=5 // pred_check
      _
    $region10: #{harmony_rec_blocks_forward.4} parent=5 // pred_check_branch
      %115 = sbr.rel (%p112) target = $region12
    $region11: #{harmony_rec_blocks_forward.4} parent=5 // pred_region
      %s116 = ssub.s32 %s8, 1
    $region12: #{harmony_rec_blocks_forward.4} parent=5 // pred_fallthru
      _
    %p117 = scmp.lt.s32.totalorder %s8, 2
    // Predicated region
    $region13: #{harmony_rec_blocks_forward.4} parent=5 // pred_check
      %p118 = pneg %p117
    $region14: #{harmony_rec_blocks_forward.4} parent=5 // pred_check_branch
      %120 = sbr.rel (%p118) target = $region16
    $region15: #{harmony_rec_blocks_forward.4} parent=5 // pred_region
      // Predicated region
      $region17: #{harmony_rec_blocks_forward.4} parent=15 // pred_check
        %p121 = pneg %p40
      $region18: #{harmony_rec_blocks_forward.4} parent=15 // pred_check_branch
        %123 = sbr.rel (%p121) target = $region20
      $region19: #{harmony_rec_blocks_forward.4} parent=15 // pred_region
        %p124 = scmp.lt.s32.totalorder %s15, 1
        %s125 = scalar_select %p124, %s15, 1
        %s126 = smul.addr %s125, 4
        %s127 = smul.addr %s126, 4
        %s128 = scalar_lea.vmem %s0, %s127
      $region20: #{harmony_rec_blocks_forward.4} parent=15 // pred_fallthru
        _
      // Predicated region
      $region21: #{harmony_rec_blocks_forward.4} parent=15 // pred_check
        %p129 = pneg %p68
      $region22: #{harmony_rec_blocks_forward.4} parent=15 // pred_check_branch
        %131 = sbr.rel (%p129) target = $region24
      $region23: #{harmony_rec_blocks_forward.4} parent=15 // pred_region
        %p132 = scmp.lt.s32.totalorder %s15, 1
        %s133 = scalar_select %p132, %s15, 1
        %p134 = scmp.lt.s32.totalorder %s16, 0
        %s135 = scalar_select %p134, %s16, 0
        %s136 = smul.addr %s133, 16
        %s137 = sadd.s32 %s135, %s136
        %s138 = smul.addr %s137, 4
        %s139 = scalar_lea.vmem %s1, %s138
      $region24: #{harmony_rec_blocks_forward.4} parent=15 // pred_fallthru
        _
    $region16: #{harmony_rec_blocks_forward.4} parent=5 // pred_fallthru
      _
    %p140 = scmp.le.s32.totalorder 1, %s8
    %p141 = scmp.lt.s32.totalorder %s8, 3
    %p142 = pnand %p140, %p141
    %p143 = pneg %p142
    // Predicated region
    $region25: #{harmony_rec_blocks_forward.4} parent=5 // pred_check
      _
    $region26: #{harmony_rec_blocks_forward.4} parent=5 // pred_check_branch
      %145 = sbr.rel (%p142) target = $region28
    $region27: #{harmony_rec_blocks_forward.4} parent=5 // pred_region
      %s146 = ssub.s32 %s8, 1
      %p147 = scmp.lt.s32.totalorder %s17, 1
      %s148 = scalar_select %p147, %s17, 1
      %s149 = smul.addr %s148, 4
      %s150 = smul.addr %s149, 4
      %s151 = scalar_lea.vmem %s0, %s150
      %p152 = pneg %p46
      %p153 = pneg %p43
      %p154 = scmp.lt.s32.totalorder %s17, 1
      %s155 = scalar_select %p154, %s17, 1
      %p156 = scmp.lt.s32.totalorder %s18, 0
      %s157 = scalar_select %p156, %s18, 0
      %s158 = smul.addr %s155, 16
      %s159 = sadd.s32 %s157, %s158
      %s160 = smul.addr %s159, 4
      %s161 = scalar_lea.vmem %s1, %s160
      %p162 = pneg %p74
      %p163 = pneg %p71
      %p164 = pneg %p102
      %p165 = pneg %p99
      %p166 = scmp.lt.s32.totalorder %s17, 1
      %s167 = scalar_select %p166, %s17, 1
      %p168 = scmp.lt.s32.totalorder %s18, 0
      %s169 = scalar_select %p168, %s18, 0
      %s170 = smul.addr %s167, 4
      %s171 = sadd.s32 %s169, %s170
      %s172 = smul.addr %s171, 4
      %s173 = scalar_lea.vmem %s2, %s172
      %p174 = scmp.lt.s32.totalorder %s17, 1
      %s175 = scalar_select %p174, %s17, 1
      %s176 = smul.addr %s175, 4
      %s177 = smul.addr %s176, 4
      %s178 = scalar_lea.vmem %s0, %s177
      %p179 = scmp.lt.s32.totalorder %s17, 1
      %s180 = scalar_select %p179, %s17, 1
      %p181 = scmp.lt.s32.totalorder %s18, 0
      %s182 = scalar_select %p181, %s18, 0
      %s183 = smul.addr %s180, 16
      %s184 = sadd.s32 %s182, %s183
      %s185 = smul.addr %s184, 4
      %s186 = scalar_lea.vmem %s1, %s185
      %p187 = scmp.lt.s32.totalorder %s17, 1
      %s188 = scalar_select %p187, %s17, 1
      %p189 = scmp.lt.s32.totalorder %s18, 0
      %s190 = scalar_select %p189, %s18, 0
      %s191 = smul.addr %s188, 4
      %s192 = sadd.s32 %s190, %s191
      %s193 = smul.addr %s192, 4
      %s194 = scalar_lea.vmem %s2, %s193
      %v196 = vld [vmem:[%s178] sm:$0xf]
      %v197 = vld [vmem:[%s178 + $0x4] sm:$0xf]
      %v198 = vld [vmem:[%s178 + $0x8] sm:$0xf]
      %v199 = vld [vmem:[%s178 + $0xc] sm:$0xf]
      %v200 = vld [vmem:[%s186] sm:$0xf]
      %v201 = vld [vmem:[%s186 + $0x4] sm:$0xf]
      %v202 = vld [vmem:[%s186 + $0x8] sm:$0xf]
      %v203 = vld [vmem:[%s186 + $0xc] sm:$0xf]
      %v204 = vld [vmem:[%s186 + $0x10] sm:$0xf]
      %v205 = vld [vmem:[%s186 + $0x14] sm:$0xf]
      %v206 = vld [vmem:[%s186 + $0x18] sm:$0xf]
      %v207 = vld [vmem:[%s186 + $0x1c] sm:$0xf]
      %v208 = vld [vmem:[%s186 + $0x20] sm:$0xf]
      %v209 = vld [vmem:[%s186 + $0x24] sm:$0xf]
      %v210 = vld [vmem:[%s186 + $0x28] sm:$0xf]
      %v211 = vld [vmem:[%s186 + $0x2c] sm:$0xf]
      %v212 = vld [vmem:[%s186 + $0x30] sm:$0xf]
      %v213 = vld [vmem:[%s186 + $0x34] sm:$0xf]
      %v214 = vld [vmem:[%s186 + $0x38] sm:$0xf]
      %v215 = vld [vmem:[%s186 + $0x3c] sm:$0xf]
      %v220 = vunpack.c.l.b16 %v196
      %v221 = vunpack.c.l.b16 %v197
      %v222 = vunpack.c.l.b16 %v198
      %v223 = vunpack.c.l.b16 %v199
      %v224 = vpack.c.b16 %v221, %v220
      %v225 = vpack.c.b16 %v223, %v222
      %v244 = vunpack.c.l.b16 %v200
      %v245 = vunpack.c.l.b16 %v201
      %v246 = vunpack.c.l.b16 %v202
      %v247 = vunpack.c.l.b16 %v203
      %v248 = vunpack.c.l.b16 %v204
      %v249 = vunpack.c.l.b16 %v205
      %v250 = vunpack.c.l.b16 %v206
      %v251 = vunpack.c.l.b16 %v207
      %v252 = vunpack.c.l.b16 %v208
      %v253 = vunpack.c.l.b16 %v209
      %v254 = vunpack.c.l.b16 %v210
      %v255 = vunpack.c.l.b16 %v211
      %v256 = vunpack.c.l.b16 %v212
      %v257 = vunpack.c.l.b16 %v213
      %v258 = vunpack.c.l.b16 %v214
      %v259 = vunpack.c.l.b16 %v215
      %v260 = vpack.c.b16 %v245, %v244
      %v261 = vpack.c.b16 %v247, %v246
      %v262 = vpack.c.b16 %v249, %v248
      %v263 = vpack.c.b16 %v251, %v250
      %v264 = vpack.c.b16 %v253, %v252
      %v265 = vpack.c.b16 %v255, %v254
      %v266 = vpack.c.b16 %v257, %v256
      %v267 = vpack.c.b16 %v259, %v258
      %276 = vmatprep.subr.bf16.mxu0 0
      %277 = vmatpush1.bf16.msra.mxu0 %v267
      %278 = vmatprep.subr.bf16.mxu0 0
      %279 = vmatpush1.bf16.msra.mxu0 %v266
      %280 = vmatprep.subr.bf16.mxu0 0
      %281 = vmatpush1.bf16.msra.mxu0 %v265
      %282 = vmatprep.subr.bf16.mxu0 0
      %283 = vmatpush1.bf16.msra.mxu0 %v264
      %284 = vmatprep.subr.bf16.mxu0 0
      %285 = vmatpush1.bf16.msra.mxu0 %v263
      %286 = vmatprep.subr.bf16.mxu0 0
      %287 = vmatpush1.bf16.msra.mxu0 %v262
      %288 = vmatprep.subr.bf16.mxu0 0
      %289 = vmatpush1.bf16.msra.mxu0 %v261
      %290 = vmatprep.subr.bf16.mxu0 0
      %291 = vmatpush1.bf16.msra.mxu0 %v260
      %292 = vmatprep.subr.bf16.mxu0 0
      %293 = vmatpush2.bf16.msra.mxu0 0
      %294 = vmatprep.subr.bf16.mxu0 0
      %295 = vmatpush2.bf16.msra.mxu0 0
      %296 = vmatprep.subr.bf16.mxu0 0
      %297 = vmatpush2.bf16.msra.mxu0 0
      %298 = vmatprep.subr.bf16.mxu0 0
      %299 = vmatpush2.bf16.msra.mxu0 0
      %300 = vmatprep.subr.bf16.mxu0 0
      %301 = vmatpush2.bf16.msra.mxu0 0
      %302 = vmatprep.subr.bf16.mxu0 0
      %303 = vmatpush2.bf16.msra.mxu0 0
      %304 = vmatprep.subr.bf16.mxu0 0
      %305 = vmatpush2.bf16.msra.mxu0 0
      %306 = vmatprep.subr.bf16.mxu0 0
      %307 = vmatpush2.bf16.msra.mxu0 0
      %308 = vmatprep.mubr.bf16.mxu0 0
      %309 = vmatmul.mubr.bf16.gmra.mxu0 %v224
      %v310 = vpop.f32.mrf.mxu0
      %v311 = vadd.f32 0.0, %v310
      %v312 = vpop.f32.mrf.mxu0
      %v313 = vpop.f32.mrf.mxu0
      %v314 = vadd.f32 0.0, %v313
      %v315 = vpop.f32.mrf.mxu0
      %316 = vmatprep.mubr.bf16.mxu0 0
      %317 = vmatmul.mubr.bf16.gmra.mxu0 %v225
      %v318 = vpop.f32.mrf.mxu0
      %v319 = vadd.f32 0.0, %v318
      %v320 = vpop.f32.mrf.mxu0
      %v321 = vpop.f32.mrf.mxu0
      %v322 = vadd.f32 0.0, %v321
      %v323 = vpop.f32.mrf.mxu0
      %324 = vdwg.mxu0
      %v325 = vpack.c.bf16 %v314, %v311
      %v326 = vpack.c.bf16 %v322, %v319
      %v329 = vunpack.c.l.b16 %v325
      %v330 = vunpack.c.h.b16 %v325
      %v331 = vunpack.c.l.b16 %v326
      %v332 = vunpack.c.h.b16 %v326
      %v333 = vpack.c.b16 %v329, %v329
      %v334 = vpack.c.b16 %v330, %v330
      %v335 = vpack.c.b16 %v331, %v331
      %v336 = vpack.c.b16 %v332, %v332
      %341 = vst [vmem:[%s194] sm:$0xf] %v333
      %342 = vst [vmem:[%s194 + $0x4] sm:$0xf] %v334
      %343 = vst [vmem:[%s194 + $0x8] sm:$0xf] %v335
      %344 = vst [vmem:[%s194 + $0xc] sm:$0xf] %v336
      %p345 = scmp.lt.s32.totalorder %s17, 1
      %s346 = scalar_select %p345, %s17, 1
      %p347 = scmp.lt.s32.totalorder %s18, 0
      %s348 = scalar_select %p347, %s18, 0
      %s349 = smul.addr %s346, 4
      %s350 = sadd.s32 %s348, %s349
      %s351 = smul.addr %s350, 4
      %s352 = scalar_lea.vmem %s2, %s351
      // Predicated region
      $region29: #{harmony_rec_blocks_forward.4} parent=27 // pred_check
        %p353 = pneg %p99
      $region30: #{harmony_rec_blocks_forward.4} parent=27 // pred_check_branch
        %355 = sbr.rel (%p353) target = $region32
      $region31: #{harmony_rec_blocks_forward.4} parent=27 // pred_region
        _
      $region32: #{harmony_rec_blocks_forward.4} parent=27 // pred_fallthru
        _
    $region28: #{harmony_rec_blocks_forward.4} parent=5 // pred_fallthru
      _
    %p356 = scmp.le.s32.totalorder 2, %s8
    // Predicated region
    $region33: #{harmony_rec_blocks_forward.4} parent=5 // pred_check
      %p357 = pneg %p356
    $region34: #{harmony_rec_blocks_forward.4} parent=5 // pred_check_branch
      %359 = sbr.rel (%p357) target = $region36
    $region35: #{harmony_rec_blocks_forward.4} parent=5 // pred_region
      %s360 = ssub.s32 %s8, 2
      // Predicated region
      $region37: #{harmony_rec_blocks_forward.4} parent=35 // pred_check
        %p361 = pneg %p105
      $region38: #{harmony_rec_blocks_forward.4} parent=35 // pred_check_branch
        %363 = sbr.rel (%p361) target = $region40
      $region39: #{harmony_rec_blocks_forward.4} parent=35 // pred_region
        %p364 = scmp.lt.s32.totalorder %s19, 1
        %s365 = scalar_select %p364, %s19, 1
        %p366 = scmp.lt.s32.totalorder %s20, 0
        %s367 = scalar_select %p366, %s20, 0
        %s368 = smul.addr %s365, 4
        %s369 = sadd.s32 %s367, %s368
        %s370 = smul.addr %s369, 4
        %s371 = scalar_lea.vmem %s2, %s370
      $region40: #{harmony_rec_blocks_forward.4} parent=35 // pred_fallthru
        _
    $region36: #{harmony_rec_blocks_forward.4} parent=5 // pred_fallthru
      _
  $region6: #{harmony_rec_blocks_forward.4} parent=0 // loop_footer
    %s12 = sadd.s32 1, %s8
  $region7: #{harmony_rec_blocks_forward.4} parent=0 // loop_footer_branch
    %7 = sbr.rel target = $region3
  $region8: #{harmony_rec_blocks_forward.4} parent=0 // loop_exit
    _

// kernel: harmony_rec_blocks_forward.5
$region0: #{harmony_rec_blocks_forward.5}
  #allocation0 [shape = 'u32[]', space=smem, size = 0x4, offset = 0x4, fixed_abs, tag = 'smem constant byte address 0x4 - core index']
  #allocation1 [shape = 'u32[144,128]{1,0:T(1,128)}', space=vmem, size = 0x12000, scoped, tag = 'internal scratch']
  %s0 = inlined_call_operand.vmem [shape: bf16[2,16,512], index: 0, kind: input, shape index: {}]
  %s1 = inlined_call_operand.vmem [shape: f32[2,8,384], index: 1, kind: input, shape index: {}]
  %s2 = inlined_call_operand.vmem [shape: bf16[9,8,16], index: 2, kind: input, shape index: {}]
  %s3 = inlined_call_operand.vmem [shape: f32[8,1], index: 3, kind: input, shape index: {}]
  %s4 = inlined_call_operand.vmem [shape: f32[2,8,384], index: 4, kind: output, shape index: {}]
  %s5 = sld [smem:[#allocation0]]
  $region49: #{harmony_rec_blocks_forward.5} parent=0
    _
  %s7 = ssub.s32 1, %s5
  %s8 = scalar_select 0, %s7, %s5
  loop: start=0, step=1, limit=4
  $region2: #{harmony_rec_blocks_forward.5} parent=0 // loop_pre_header
    _
  $region3: #{harmony_rec_blocks_forward.5} parent=0 // loop_header
    %s10 = sphi 0, %s14
    %p11 = scmp.ge.s32.totalorder %s10, 4
    %s20 = sphi 0, %s22
    %s23 = sphi 0, %s20
    %s24 = sphi 0, %s23
    %s40 = sphi 0, %s24
    %s46 = sphi 0, %s48
    %s49 = sphi 0, %s46
    %s50 = sphi 0, %s49
    %s66 = sphi 0, %s50
    %s70 = sphi 0, %s70
    %s72 = sphi 0, %s70
    %s73 = sphi 0, %s72
    %s87 = sphi 0, %s73
    %s91 = sphi 0, %s91
    %s93 = sphi 0, %s91
    %s94 = sphi 0, %s93
    %s108 = sphi 0, %s94
    %s114 = sphi 0, %s116
    %s117 = sphi 0, %s114
    %s118 = sphi 0, %s117
    %s134 = sphi 0, %s118
  $region4: #{harmony_rec_blocks_forward.5} parent=0 // loop_header_branch
    %13 = sbr.rel (%p11) target = $region8
  $region5: #{harmony_rec_blocks_forward.5} parent=0 // loop_body
    %s15 = ssub.s32 %s10, 1
    %s16 = ssub.s32 %s10, 2
    %s17 = sadd.s32 %s10, 1
    %s18 = ssub.s32 %s10, %s17
    %p19 = scmp.eq.s32.totalorder %s18, 0
    %s21 = sadd.s32 %s20, 1
    %s22 = scalar_select %p19, %s20, %s21
    %p25 = pneg %p19
    %p26 = scmp.eq.s32.totalorder %s10, 1
    %p27 = por %p25, %p26
    %p28 = scmp.ne.s32.totalorder %s20, %s23
    %p29 = scmp.eq.s32.totalorder %s10, 0
    %p30 = por %p28, %p29
    %p31 = scmp.ne.s32.totalorder %s20, %s23
    %p32 = scmp.eq.s32.totalorder %s15, 1
    %p33 = por %p31, %p32
    %p34 = scmp.ne.s32.totalorder %s23, %s24
    %p35 = scmp.eq.s32.totalorder %s15, 0
    %p36 = por %p34, %p35
    %p37 = scmp.ne.s32.totalorder %s23, %s24
    %p38 = scmp.eq.s32.totalorder %s16, 1
    %p39 = por %p37, %p38
    %p41 = scmp.ne.s32.totalorder %s24, %s40
    %p42 = scmp.eq.s32.totalorder %s16, 0
    %p43 = por %p41, %p42
    %s44 = ssub.s32 %s10, %s17
    %p45 = scmp.eq.s32.totalorder %s44, 0
    %s47 = sadd.s32 %s46, 1
    %s48 = scalar_select %p45, %s46, %s47
    %p51 = pneg %p45
    %p52 = scmp.eq.s32.totalorder %s10, 1
    %p53 = por %p51, %p52
    %p54 = scmp.ne.s32.totalorder %s46, %s49
    %p55 = scmp.eq.s32.totalorder %s10, 0
    %p56 = por %p54, %p55
    %p57 = scmp.ne.s32.totalorder %s46, %s49
    %p58 = scmp.eq.s32.totalorder %s15, 1
    %p59 = por %p57, %p58
    %p60 = scmp.ne.s32.totalorder %s49, %s50
    %p61 = scmp.eq.s32.totalorder %s15, 0
    %p62 = por %p60, %p61
    %p63 = scmp.ne.s32.totalorder %s49, %s50
    %p64 = scmp.eq.s32.totalorder %s16, 1
    %p65 = por %p63, %p64
    %p67 = scmp.ne.s32.totalorder %s50, %s66
    %p68 = scmp.eq.s32.totalorder %s16, 0
    %p69 = por %p67, %p68
    %s71 = sadd.s32 %s70, 1
    %p74 = scmp.eq.s32.totalorder %s10, 1
    %p75 = scmp.ne.s32.totalorder %s70, %s72
    %p76 = scmp.eq.s32.totalorder %s10, 0
    %p77 = por %p75, %p76
    %p78 = scmp.ne.s32.totalorder %s70, %s72
    %p79 = scmp.eq.s32.totalorder %s15, 1
    %p80 = por %p78, %p79
    %p81 = scmp.ne.s32.totalorder %s72, %s73
    %p82 = scmp.eq.s32.totalorder %s15, 0
    %p83 = por %p81, %p82
    %p84 = scmp.ne.s32.totalorder %s72, %s73
    %p85 = scmp.eq.s32.totalorder %s16, 1
    %p86 = por %p84, %p85
    %p88 = scmp.ne.s32.totalorder %s73, %s87
    %p89 = scmp.eq.s32.totalorder %s16, 0
    %p90 = por %p88, %p89
    %s92 = sadd.s32 %s91, 1
    %p95 = scmp.eq.s32.totalorder %s10, 1
    %p96 = scmp.ne.s32.totalorder %s91, %s93
    %p97 = scmp.eq.s32.totalorder %s10, 0
    %p98 = por %p96, %p97
    %p99 = scmp.ne.s32.totalorder %s91, %s93
    %p100 = scmp.eq.s32.totalorder %s15, 1
    %p101 = por %p99, %p100
    %p102 = scmp.ne.s32.totalorder %s93, %s94
    %p103 = scmp.eq.s32.totalorder %s15, 0
    %p104 = por %p102, %p103
    %p105 = scmp.ne.s32.totalorder %s93, %s94
    %p106 = scmp.eq.s32.totalorder %s16, 1
    %p107 = por %p105, %p106
    %p109 = scmp.ne.s32.totalorder %s94, %s108
    %p110 = scmp.eq.s32.totalorder %s16, 0
    %p111 = por %p109, %p110
    %s112 = ssub.s32 %s10, %s17
    %p113 = scmp.eq.s32.totalorder %s112, 0
    %s115 = sadd.s32 %s114, 1
    %s116 = scalar_select %p113, %s114, %s115
    %p119 = pneg %p113
    %p120 = scmp.eq.s32.totalorder %s10, 1
    %p121 = por %p119, %p120
    %p122 = scmp.ne.s32.totalorder %s114, %s117
    %p123 = scmp.eq.s32.totalorder %s10, 0
    %p124 = por %p122, %p123
    %p125 = scmp.ne.s32.totalorder %s114, %s117
    %p126 = scmp.eq.s32.totalorder %s15, 1
    %p127 = por %p125, %p126
    %p128 = scmp.ne.s32.totalorder %s117, %s118
    %p129 = scmp.eq.s32.totalorder %s15, 0
    %p130 = por %p128, %p129
    %p131 = scmp.ne.s32.totalorder %s117, %s118
    %p132 = scmp.eq.s32.totalorder %s16, 1
    %p133 = por %p131, %p132
    %p135 = scmp.ne.s32.totalorder %s118, %s134
    %p136 = scmp.eq.s32.totalorder %s16, 0
    %p137 = por %p135, %p136
    %p138 = scmp.le.s32.totalorder 1, %s10
    %p139 = scmp.lt.s32.totalorder %s10, 3
    %p140 = pnand %p138, %p139
    %p141 = pneg %p140
    // Predicated region
    $region9: #{harmony_rec_blocks_forward.5} parent=5 // pred_check
      _
    $region10: #{harmony_rec_blocks_forward.5} parent=5 // pred_check_branch
      %143 = sbr.rel (%p140) target = $region12
    $region11: #{harmony_rec_blocks_forward.5} parent=5 // pred_region
      %s144 = ssub.s32 %s10, 1
      // Predicated region
      $region13: #{harmony_rec_blocks_forward.5} parent=11 // pred_check
        %p145 = pneg %p83
      $region14: #{harmony_rec_blocks_forward.5} parent=11 // pred_check_branch
        %147 = sbr.rel (%p145) target = $region16
      $region15: #{harmony_rec_blocks_forward.5} parent=11 // pred_region
        _
      $region16: #{harmony_rec_blocks_forward.5} parent=11 // pred_fallthru
        _
      // Predicated region
      $region17: #{harmony_rec_blocks_forward.5} parent=11 // pred_check
        %p148 = pneg %p104
      $region18: #{harmony_rec_blocks_forward.5} parent=11 // pred_check_branch
        %150 = sbr.rel (%p148) target = $region20
      $region19: #{harmony_rec_blocks_forward.5} parent=11 // pred_region
        _
      $region20: #{harmony_rec_blocks_forward.5} parent=11 // pred_fallthru
        _
    $region12: #{harmony_rec_blocks_forward.5} parent=5 // pred_fallthru
      _
    %p151 = scmp.lt.s32.totalorder %s10, 2
    // Predicated region
    $region21: #{harmony_rec_blocks_forward.5} parent=5 // pred_check
      %p152 = pneg %p151
    $region22: #{harmony_rec_blocks_forward.5} parent=5 // pred_check_branch
      %154 = sbr.rel (%p152) target = $region24
    $region23: #{harmony_rec_blocks_forward.5} parent=5 // pred_region
      // Predicated region
      $region25: #{harmony_rec_blocks_forward.5} parent=23 // pred_check
        %p155 = pneg %p30
      $region26: #{harmony_rec_blocks_forward.5} parent=23 // pred_check_branch
        %157 = sbr.rel (%p155) target = $region28
      $region27: #{harmony_rec_blocks_forward.5} parent=23 // pred_region
        %p158 = scmp.lt.s32.totalorder %s10, 1
        %s159 = scalar_select %p158, %s10, 1
        %s160 = smul.addr %s159, 8
        %s161 = smul.addr %s160, 4
        %s162 = scalar_lea.vmem %s0, %s161
      $region28: #{harmony_rec_blocks_forward.5} parent=23 // pred_fallthru
        _
      // Predicated region
      $region29: #{harmony_rec_blocks_forward.5} parent=23 // pred_check
        %p163 = pneg %p56
      $region30: #{harmony_rec_blocks_forward.5} parent=23 // pred_check_branch
        %165 = sbr.rel (%p163) target = $region32
      $region31: #{harmony_rec_blocks_forward.5} parent=23 // pred_region
        %p166 = scmp.lt.s32.totalorder %s10, 1
        %s167 = scalar_select %p166, %s10, 1
        %s168 = smul.addr %s167, 3
        %s169 = smul.addr %s168, 8
        %s170 = scalar_lea.vmem %s1, %s169
      $region32: #{harmony_rec_blocks_forward.5} parent=23 // pred_fallthru
        _
    $region24: #{harmony_rec_blocks_forward.5} parent=5 // pred_fallthru
      _
    %p171 = scmp.le.s32.totalorder 1, %s10
    %p172 = scmp.lt.s32.totalorder %s10, 3
    %p173 = pnand %p171, %p172
    %p174 = pneg %p173
    // Predicated region
    $region33: #{harmony_rec_blocks_forward.5} parent=5 // pred_check
      _
    $region34: #{harmony_rec_blocks_forward.5} parent=5 // pred_check_branch
      %176 = sbr.rel (%p173) target = $region36
    $region35: #{harmony_rec_blocks_forward.5} parent=5 // pred_region
      %s177 = ssub.s32 %s10, 1
      %p178 = scmp.lt.s32.totalorder %s15, 1
      %s179 = scalar_select %p178, %s15, 1
      %s180 = smul.addr %s179, 8
      %s181 = smul.addr %s180, 4
      %s182 = scalar_lea.vmem %s0, %s181
      %p183 = pneg %p36
      %p184 = pneg %p33
      %p185 = scmp.lt.s32.totalorder %s15, 1
      %s186 = scalar_select %p185, %s15, 1
      %s187 = smul.addr %s186, 3
      %s188 = smul.addr %s187, 8
      %s189 = scalar_lea.vmem %s1, %s188
      %p190 = pneg %p62
      %p191 = pneg %p59
      %p192 = pneg %p83
      %p193 = pneg %p80
      %p194 = pneg %p104
      %p195 = pneg %p101
      %p196 = pneg %p130
      %p197 = pneg %p127
      %p198 = scmp.lt.s32.totalorder %s15, 1
      %s199 = scalar_select %p198, %s15, 1
      %s200 = smul.addr %s199, 3
      %s201 = smul.addr %s200, 8
      %s202 = scalar_lea.vmem %s4, %s201
      %p203 = scmp.lt.s32.totalorder %s15, 1
      %s204 = scalar_select %p203, %s15, 1
      %s205 = smul.addr %s204, 8
      %s206 = smul.addr %s205, 4
      %s207 = scalar_lea.vmem %s0, %s206
      %p208 = scmp.lt.s32.totalorder %s15, 1
      %s209 = scalar_select %p208, %s15, 1
      %s210 = smul.addr %s209, 3
      %s211 = smul.addr %s210, 8
      %s212 = scalar_lea.vmem %s1, %s211
      %p213 = scmp.lt.s32.totalorder %s15, 1
      %s214 = scalar_select %p213, %s15, 1
      %s215 = smul.addr %s214, 3
      %s216 = smul.addr %s215, 8
      %s217 = scalar_lea.vmem %s4, %s216
      %v219 = vld [vmem:[%s3] sm:$0xff]
      %v220 = vld [vmem:[%s2] sm:$0xf]
      %v221 = vld [vmem:[%s207] sm:$0xff]
      %v222 = vld [vmem:[%s207 + $0x8] sm:$0xf]
      %v223 = vld [vmem:[%s207 + $0x10] sm:$0xff]
      %v224 = vld [vmem:[%s207 + $0x18] sm:$0xf]
      %s225 = scalar_lea.vmem %s2, 4
      %v226 = vld [vmem:[%s225] sm:$0xf]
      %v227 = vld [vmem:[%s207] sm:$0xff]
      %v228 = vld [vmem:[%s207 + $0x8] sm:$0xff]
      %v229 = vld [vmem:[%s207 + $0x10] sm:$0xff]
      %v230 = vld [vmem:[%s207 + $0x18] sm:$0xff]
      %v235 = vunpack.c.l.b16 %v227
      %v236 = vunpack.c.h.b16 %v227
      %v237 = vunpack.c.l.b16 %v228
      %v238 = vunpack.c.h.b16 %v228
      %v239 = vunpack.c.l.b16 %v229
      %v240 = vunpack.c.h.b16 %v229
      %v241 = vunpack.c.l.b16 %v230
      %v242 = vunpack.c.h.b16 %v230
      %v243 = vpack.c.b16 %v239, %v235
      %v244 = vpack.c.b16 %v240, %v236
      %v245 = vpack.c.b16 %v241, %v237
      %v246 = vpack.c.b16 %v242, %v238
      %247 = vrot.lane.b32.xlu0 %v243, 127
      %v248 = vpop.permute.xlu0 %247
      %249 = vrot.lane.b32.xlu0 %v244, 127
      %v250 = vpop.permute.xlu0 %249
      %251 = vrot.lane.b32.xlu0 %v245, 127
      %v252 = vpop.permute.xlu0 %251
      %253 = vrot.lane.b32.xlu0 %v246, 127
      %v254 = vpop.permute.xlu0 %253
      %vm255 = vcmask 1039360
      %v256 = vsel %vm255, %v248, %v250
      %v257 = vsel %vm255, %v250, %v252
      %v258 = vsel %vm255, %v252, %v254
      %vm262 = vcmask 130048
      %v264 = vsel %vm262, %v226, 0
      %266 = vmatprep.subr.bf16.mxu0 0
      %267 = vmatpush1.bf16.msra.mxu0 0
      %268 = vmatprep.subr.bf16.mxu0 0
      %269 = vmatpush1.bf16.msra.mxu0 0
      %270 = vmatprep.subr.bf16.mxu0 0
      %271 = vmatpush1.bf16.msra.mxu0 0
      %272 = vmatprep.subr.bf16.mxu0 0
      %273 = vmatpush1.bf16.msra.mxu0 0
      %274 = vmatprep.subr.bf16.mxu0 0
      %275 = vmatpush1.bf16.msra.mxu0 0
      %276 = vmatprep.subr.bf16.mxu0 0
      %277 = vmatpush1.bf16.msra.mxu0 0
      %278 = vmatprep.subr.bf16.mxu0 0
      %279 = vmatpush1.bf16.msra.mxu0 0
      %280 = vmatprep.subr.bf16.mxu0 %v257
      %281 = vmatpush1.bf16.msra.mxu0 %v256
      %282 = vmatprep.subr.bf16.mxu0 0
      %283 = vmatpush2.bf16.msra.mxu0 0
      %284 = vmatprep.subr.bf16.mxu0 0
      %285 = vmatpush2.bf16.msra.mxu0 0
      %286 = vmatprep.subr.bf16.mxu0 0
      %287 = vmatpush2.bf16.msra.mxu0 0
      %288 = vmatprep.subr.bf16.mxu0 0
      %289 = vmatpush2.bf16.msra.mxu0 0
      %290 = vmatprep.subr.bf16.mxu0 0
      %291 = vmatpush2.bf16.msra.mxu0 0
      %292 = vmatprep.subr.bf16.mxu0 0
      %293 = vmatpush2.bf16.msra.mxu0 0
      %294 = vmatprep.subr.bf16.mxu0 0
      %295 = vmatpush2.bf16.msra.mxu0 0
      %296 = vmatprep.subr.bf16.mxu0 0
      %297 = vmatpush2.bf16.msra.mxu0 0
      %298 = vmatprep.mubr.bf16.mxu0 0
      %299 = vmatmul.mubr.bf16.gmra.mxu0 %v264
      %v300 = vpop.f32.mrf.mxu0
      %v301 = vadd.f32 0.0, %v300
      %v302 = vpop.f32.mrf.mxu0
      %v303 = vadd.f32 0.0, %v302
      %v304 = vpop.f32.mrf.mxu0
      %v305 = vpop.f32.mrf.mxu0
      %306 = vdwg.mxu0
      %307 = vmatprep.subr.bf16.mxu0 0
      %308 = vmatpush1.bf16.msra.mxu0 0
      %309 = vmatprep.subr.bf16.mxu0 0
      %310 = vmatpush1.bf16.msra.mxu0 0
      %311 = vmatprep.subr.bf16.mxu0 0
      %312 = vmatpush1.bf16.msra.mxu0 0
      %313 = vmatprep.subr.bf16.mxu0 0
      %314 = vmatpush1.bf16.msra.mxu0 0
      %315 = vmatprep.subr.bf16.mxu0 0
      %316 = vmatpush1.bf16.msra.mxu0 0
      %317 = vmatprep.subr.bf16.mxu0 0
      %318 = vmatpush1.bf16.msra.mxu0 0
      %319 = vmatprep.subr.bf16.mxu0 0
      %320 = vmatpush1.bf16.msra.mxu0 0
      %321 = vmatprep.subr.bf16.mxu0 0
      %322 = vmatpush1.bf16.msra.mxu0 %v258
      %323 = vmatprep.subr.bf16.mxu0 0
      %324 = vmatpush2.bf16.msra.mxu0 0
      %325 = vmatprep.subr.bf16.mxu0 0
      %326 = vmatpush2.bf16.msra.mxu0 0
      %327 = vmatprep.subr.bf16.mxu0 0
      %328 = vmatpush2.bf16.msra.mxu0 0
      %329 = vmatprep.subr.bf16.mxu0 0
      %330 = vmatpush2.bf16.msra.mxu0 0
      %331 = vmatprep.subr.bf16.mxu0 0
      %332 = vmatpush2.bf16.msra.mxu0 0
      %333 = vmatprep.subr.bf16.mxu0 0
      %334 = vmatpush2.bf16.msra.mxu0 0
      %335 = vmatprep.subr.bf16.mxu0 0
      %336 = vmatpush2.bf16.msra.mxu0 0
      %337 = vmatprep.subr.bf16.mxu0 0
      %338 = vmatpush2.bf16.msra.mxu0 0
      %339 = vmatprep.mubr.bf16.mxu0 0
      %340 = vmatmul.mubr.bf16.gmra.mxu0 %v264
      %v341 = vpop.f32.mrf.mxu0
      %v342 = vadd.f32 0.0, %v341
      %v343 = vpop.f32.mrf.mxu0
      %v344 = vpop.f32.mrf.mxu0
      %v345 = vpop.f32.mrf.mxu0
      %346 = vdwg.mxu0
      %v351 = vunpack.c.l.b16 %v221
      %v352 = vunpack.c.h.b16 %v221
      %v353 = vunpack.c.l.b16 %v222
      %v354 = vunpack.c.l.b16 %v223
      %v355 = vunpack.c.h.b16 %v223
      %v356 = vunpack.c.l.b16 %v224
      %v357 = vpack.c.b16 %v354, %v351
      %v358 = vpack.c.b16 %v355, %v352
      %v359 = vpack.c.b16 %v356, %v353
      %v364 = vsel %vm262, %v220, 0
      %366 = vmatprep.subr.bf16.mxu0 0
      %367 = vmatpush1.bf16.msra.mxu0 0
      %368 = vmatprep.subr.bf16.mxu0 0
      %369 = vmatpush1.bf16.msra.mxu0 0
      %370 = vmatprep.subr.bf16.mxu0 0
      %371 = vmatpush1.bf16.msra.mxu0 0
      %372 = vmatprep.subr.bf16.mxu0 0
      %373 = vmatpush1.bf16.msra.mxu0 0
      %374 = vmatprep.subr.bf16.mxu0 0
      %375 = vmatpush1.bf16.msra.mxu0 0
      %376 = vmatprep.subr.bf16.mxu0 0
      %377 = vmatpush1.bf16.msra.mxu0 0
      %378 = vmatprep.subr.bf16.mxu0 0
      %379 = vmatpush1.bf16.msra.mxu0 0
      %380 = vmatprep.subr.bf16.mxu0 %v358
      %381 = vmatpush1.bf16.msra.mxu0 %v357
      %382 = vmatprep.subr.bf16.mxu0 0
      %383 = vmatpush2.bf16.msra.mxu0 0
      %384 = vmatprep.subr.bf16.mxu0 0
      %385 = vmatpush2.bf16.msra.mxu0 0
      %386 = vmatprep.subr.bf16.mxu0 0
      %387 = vmatpush2.bf16.msra.mxu0 0
      %388 = vmatprep.subr.bf16.mxu0 0
      %389 = vmatpush2.bf16.msra.mxu0 0
      %390 = vmatprep.subr.bf16.mxu0 0
      %391 = vmatpush2.bf16.msra.mxu0 0
      %392 = vmatprep.subr.bf16.mxu0 0
      %393 = vmatpush2.bf16.msra.mxu0 0
      %394 = vmatprep.subr.bf16.mxu0 0
      %395 = vmatpush2.bf16.msra.mxu0 0
      %396 = vmatprep.subr.bf16.mxu0 0
      %397 = vmatpush2.bf16.msra.mxu0 0
      %398 = vmatprep.mubr.bf16.mxu0 0
      %399 = vmatmul.mubr.bf16.gmra.mxu0 %v364
      %v400 = vpop.f32.mrf.mxu0
      %v401 = vadd.f32 %v301, %v400
      %v402 = vpop.f32.mrf.mxu0
      %v403 = vadd.f32 %v303, %v402
      %v404 = vpop.f32.mrf.mxu0
      %v405 = vpop.f32.mrf.mxu0
      %406 = vdwg.mxu0
      %407 = vmatprep.subr.bf16.mxu0 0
      %408 = vmatpush1.bf16.msra.mxu0 0
      %409 = vmatprep.subr.bf16.mxu0 0
      %410 = vmatpush1.bf16.msra.mxu0 0
      %411 = vmatprep.subr.bf16.mxu0 0
      %412 = vmatpush1.bf16.msra.mxu0 0
      %413 = vmatprep.subr.bf16.mxu0 0
      %414 = vmatpush1.bf16.msra.mxu0 0
      %415 = vmatprep.subr.bf16.mxu0 0
      %416 = vmatpush1.bf16.msra.mxu0 0
      %417 = vmatprep.subr.bf16.mxu0 0
      %418 = vmatpush1.bf16.msra.mxu0 0
      %419 = vmatprep.subr.bf16.mxu0 0
      %420 = vmatpush1.bf16.msra.mxu0 0
      %421 = vmatprep.subr.bf16.mxu0 0
      %422 = vmatpush1.bf16.msra.mxu0 %v359
      %423 = vmatprep.subr.bf16.mxu0 0
      %424 = vmatpush2.bf16.msra.mxu0 0
      %425 = vmatprep.subr.bf16.mxu0 0
      %426 = vmatpush2.bf16.msra.mxu0 0
      %427 = vmatprep.subr.bf16.mxu0 0
      %428 = vmatpush2.bf16.msra.mxu0 0
      %429 = vmatprep.subr.bf16.mxu0 0
      %430 = vmatpush2.bf16.msra.mxu0 0
      %431 = vmatprep.subr.bf16.mxu0 0
      %432 = vmatpush2.bf16.msra.mxu0 0
      %433 = vmatprep.subr.bf16.mxu0 0
      %434 = vmatpush2.bf16.msra.mxu0 0
      %435 = vmatprep.subr.bf16.mxu0 0
      %436 = vmatpush2.bf16.msra.mxu0 0
      %437 = vmatprep.subr.bf16.mxu0 0
      %438 = vmatpush2.bf16.msra.mxu0 0
      %439 = vmatprep.mubr.bf16.mxu0 0
      %440 = vmatmul.mubr.bf16.gmra.mxu0 %v364
      %v441 = vpop.f32.mrf.mxu0
      %v442 = vadd.f32 %v342, %v441
      %v443 = vpop.f32.mrf.mxu0
      %v444 = vpop.f32.mrf.mxu0
      %v445 = vpop.f32.mrf.mxu0
      %446 = vdwg.mxu0
      %s447 = scalar_lea.vmem %s2, 8
      %v448 = vld [vmem:[%s447] sm:$0xf]
      %449 = vrot.lane.b32.xlu0 %v243, 126
      %v450 = vpop.permute.xlu0 %449
      %451 = vrot.lane.b32.xlu0 %v244, 126
      %v452 = vpop.permute.xlu0 %451
      %453 = vrot.lane.b32.xlu0 %v245, 126
      %v454 = vpop.permute.xlu0 %453
      %455 = vrot.lane.b32.xlu0 %v246, 126
      %v456 = vpop.permute.xlu0 %455
      %vm457 = vcmask 1031168
      %v458 = vsel %vm457, %v450, %v452
      %v459 = vsel %vm457, %v452, %v454
      %v460 = vsel %vm457, %v454, %v456
      %v465 = vsel %vm262, %v448, 0
      %467 = vmatprep.subr.bf16.mxu0 0
      %468 = vmatpush1.bf16.msra.mxu0 0
      %469 = vmatprep.subr.bf16.mxu0 0
      %470 = vmatpush1.bf16.msra.mxu0 0
      %471 = vmatprep.subr.bf16.mxu0 0
      %472 = vmatpush1.bf16.msra.mxu0 0
      %473 = vmatprep.subr.bf16.mxu0 0
      %474 = vmatpush1.bf16.msra.mxu0 0
      %475 = vmatprep.subr.bf16.mxu0 0
      %476 = vmatpush1.bf16.msra.mxu0 0
      %477 = vmatprep.subr.bf16.mxu0 0
      %478 = vmatpush1.bf16.msra.mxu0 0
      %479 = vmatprep.subr.bf16.mxu0 0
      %480 = vmatpush1.bf16.msra.mxu0 0
      %481 = vmatprep.subr.bf16.mxu0 %v459
      %482 = vmatpush1.bf16.msra.mxu0 %v458
      %483 = vmatprep.subr.bf16.mxu0 0
      %484 = vmatpush2.bf16.msra.mxu0 0
      %485 = vmatprep.subr.bf16.mxu0 0
      %486 = vmatpush2.bf16.msra.mxu0 0
      %487 = vmatprep.subr.bf16.mxu0 0
      %488 = vmatpush2.bf16.msra.mxu0 0
      %489 = vmatprep.subr.bf16.mxu0 0
      %490 = vmatpush2.bf16.msra.mxu0 0
      %491 = vmatprep.subr.bf16.mxu0 0
      %492 = vmatpush2.bf16.msra.mxu0 0
      %493 = vmatprep.subr.bf16.mxu0 0
      %494 = vmatpush2.bf16.msra.mxu0 0
      %495 = vmatprep.subr.bf16.mxu0 0
      %496 = vmatpush2.bf16.msra.mxu0 0
      %497 = vmatprep.subr.bf16.mxu0 0
      %498 = vmatpush2.bf16.msra.mxu0 0
      %499 = vmatprep.mubr.bf16.mxu0 0
      %500 = vmatmul.mubr.bf16.gmra.mxu0 %v465
      %v501 = vpop.f32.mrf.mxu0
      %v502 = vadd.f32 0.0, %v501
      %v503 = vpop.f32.mrf.mxu0
      %v504 = vadd.f32 0.0, %v503
      %v505 = vpop.f32.mrf.mxu0
      %v506 = vpop.f32.mrf.mxu0
      %507 = vdwg.mxu0
      %508 = vmatprep.subr.bf16.mxu0 0
      %509 = vmatpush1.bf16.msra.mxu0 0
      %510 = vmatprep.subr.bf16.mxu0 0
      %511 = vmatpush1.bf16.msra.mxu0 0
      %512 = vmatprep.subr.bf16.mxu0 0
      %513 = vmatpush1.bf16.msra.mxu0 0
      %514 = vmatprep.subr.bf16.mxu0 0
      %515 = vmatpush1.bf16.msra.mxu0 0
      %516 = vmatprep.subr.bf16.mxu0 0
      %517 = vmatpush1.bf16.msra.mxu0 0
      %518 = vmatprep.subr.bf16.mxu0 0
      %519 = vmatpush1.bf16.msra.mxu0 0
      %520 = vmatprep.subr.bf16.mxu0 0
      %521 = vmatpush1.bf16.msra.mxu0 0
      %522 = vmatprep.subr.bf16.mxu0 0
      %523 = vmatpush1.bf16.msra.mxu0 %v460
      %524 = vmatprep.subr.bf16.mxu0 0
      %525 = vmatpush2.bf16.msra.mxu0 0
      %526 = vmatprep.subr.bf16.mxu0 0
      %527 = vmatpush2.bf16.msra.mxu0 0
      %528 = vmatprep.subr.bf16.mxu0 0
      %529 = vmatpush2.bf16.msra.mxu0 0
      %530 = vmatprep.subr.bf16.mxu0 0
      %531 = vmatpush2.bf16.msra.mxu0 0
      %532 = vmatprep.subr.bf16.mxu0 0
      %533 = vmatpush2.bf16.msra.mxu0 0
      %534 = vmatprep.subr.bf16.mxu0 0
      %535 = vmatpush2.bf16.msra.mxu0 0
      %536 = vmatprep.subr.bf16.mxu0 0
      %537 = vmatpush2.bf16.msra.mxu0 0
      %538 = vmatprep.subr.bf16.mxu0 0
      %539 = vmatpush2.bf16.msra.mxu0 0
      %540 = vmatprep.mubr.bf16.mxu0 0
      %541 = vmatmul.mubr.bf16.gmra.mxu0 %v465
      %v542 = vpop.f32.mrf.mxu0
      %v543 = vadd.f32 0.0, %v542
      %v544 = vpop.f32.mrf.mxu0
      %v545 = vpop.f32.mrf.mxu0
      %v546 = vpop.f32.mrf.mxu0
      %547 = vdwg.mxu0
      %v548 = vadd.f32 %v401, %v502
      %v549 = vadd.f32 %v403, %v504
      %v550 = vadd.f32 %v442, %v543
      %s551 = scalar_lea.vmem %s2, 12
      %v552 = vld [vmem:[%s551] sm:$0xf]
      %553 = vrot.lane.b32.xlu0 %v243, 110
      %v554 = vpop.permute.xlu0 %553
      %555 = vrot.lane.b32.xlu0 %v244, 110
      %v556 = vpop.permute.xlu0 %555
      %557 = vrot.lane.b32.xlu0 %v245, 110
      %v558 = vpop.permute.xlu0 %557
      %559 = vrot.lane.b32.xlu0 %v246, 110
      %v560 = vpop.permute.xlu0 %559
      %vm561 = vcmask 900096
      %v562 = vsel %vm561, %v554, %v556
      %v563 = vsel %vm561, %v556, %v558
      %v564 = vsel %vm561, %v558, %v560
      %v569 = vsel %vm262, %v552, 0
      %571 = vmatprep.subr.bf16.mxu0 0
      %572 = vmatpush1.bf16.msra.mxu0 0
      %573 = vmatprep.subr.bf16.mxu0 0
      %574 = vmatpush1.bf16.msra.mxu0 0
      %575 = vmatprep.subr.bf16.mxu0 0
      %576 = vmatpush1.bf16.msra.mxu0 0
      %577 = vmatprep.subr.bf16.mxu0 0
      %578 = vmatpush1.bf16.msra.mxu0 0
      %579 = vmatprep.subr.bf16.mxu0 0
      %580 = vmatpush1.bf16.msra.mxu0 0
      %581 = vmatprep.subr.bf16.mxu0 0
      %582 = vmatpush1.bf16.msra.mxu0 0
      %583 = vmatprep.subr.bf16.mxu0 0
      %584 = vmatpush1.bf16.msra.mxu0 0
      %585 = vmatprep.subr.bf16.mxu0 %v563
      %586 = vmatpush1.bf16.msra.mxu0 %v562
      %587 = vmatprep.subr.bf16.mxu0 0
      %588 = vmatpush2.bf16.msra.mxu0 0
      %589 = vmatprep.subr.bf16.mxu0 0
      %590 = vmatpush2.bf16.msra.mxu0 0
      %591 = vmatprep.subr.bf16.mxu0 0
      %592 = vmatpush2.bf16.msra.mxu0 0
      %593 = vmatprep.subr.bf16.mxu0 0
      %594 = vmatpush2.bf16.msra.mxu0 0
      %595 = vmatprep.subr.bf16.mxu0 0
      %596 = vmatpush2.bf16.msra.mxu0 0
      %597 = vmatprep.subr.bf16.mxu0 0
      %598 = vmatpush2.bf16.msra.mxu0 0
      %599 = vmatprep.subr.bf16.mxu0 0
      %600 = vmatpush2.bf16.msra.mxu0 0
      %601 = vmatprep.subr.bf16.mxu0 0
      %602 = vmatpush2.bf16.msra.mxu0 0
      %603 = vmatprep.mubr.bf16.mxu0 0
      %604 = vmatmul.mubr.bf16.gmra.mxu0 %v569
      %v605 = vpop.f32.mrf.mxu0
      %v606 = vadd.f32 0.0, %v605
      %v607 = vpop.f32.mrf.mxu0
      %v608 = vadd.f32 0.0, %v607
      %v609 = vpop.f32.mrf.mxu0
      %v610 = vpop.f32.mrf.mxu0
      %611 = vdwg.mxu0
      %612 = vmatprep.subr.bf16.mxu0 0
      %613 = vmatpush1.bf16.msra.mxu0 0
      %614 = vmatprep.subr.bf16.mxu0 0
      %615 = vmatpush1.bf16.msra.mxu0 0
      %616 = vmatprep.subr.bf16.mxu0 0
      %617 = vmatpush1.bf16.msra.mxu0 0
      %618 = vmatprep.subr.bf16.mxu0 0
      %619 = vmatpush1.bf16.msra.mxu0 0
      %620 = vmatprep.subr.bf16.mxu0 0
      %621 = vmatpush1.bf16.msra.mxu0 0
      %622 = vmatprep.subr.bf16.mxu0 0
      %623 = vmatpush1.bf16.msra.mxu0 0
      %624 = vmatprep.subr.bf16.mxu0 0
      %625 = vmatpush1.bf16.msra.mxu0 0
      %626 = vmatprep.subr.bf16.mxu0 0
      %627 = vmatpush1.bf16.msra.mxu0 %v564
      %628 = vmatprep.subr.bf16.mxu0 0
      %629 = vmatpush2.bf16.msra.mxu0 0
      %630 = vmatprep.subr.bf16.mxu0 0
      %631 = vmatpush2.bf16.msra.mxu0 0
      %632 = vmatprep.subr.bf16.mxu0 0
      %633 = vmatpush2.bf16.msra.mxu0 0
      %634 = vmatprep.subr.bf16.mxu0 0
      %635 = vmatpush2.bf16.msra.mxu0 0
      %636 = vmatprep.subr.bf16.mxu0 0
      %637 = vmatpush2.bf16.msra.mxu0 0
      %638 = vmatprep.subr.bf16.mxu0 0
      %639 = vmatpush2.bf16.msra.mxu0 0
      %640 = vmatprep.subr.bf16.mxu0 0
      %641 = vmatpush2.bf16.msra.mxu0 0
      %642 = vmatprep.subr.bf16.mxu0 0
      %643 = vmatpush2.bf16.msra.mxu0 0
      %644 = vmatprep.mubr.bf16.mxu0 0
      %645 = vmatmul.mubr.bf16.gmra.mxu0 %v569
      %v646 = vpop.f32.mrf.mxu0
      %v647 = vadd.f32 0.0, %v646
      %v648 = vpop.f32.mrf.mxu0
      %v649 = vpop.f32.mrf.mxu0
      %v650 = vpop.f32.mrf.mxu0
      %651 = vdwg.mxu0
      %v652 = vadd.f32 %v548, %v606
      %v653 = vadd.f32 %v549, %v608
      %v654 = vadd.f32 %v550, %v647
      %s655 = scalar_lea.vmem %s2, 16
      %v656 = vld [vmem:[%s655] sm:$0xf]
      %657 = vrot.lane.b32.xlu0 %v243, 109
      %v658 = vpop.permute.xlu0 %657
      %659 = vrot.lane.b32.xlu0 %v244, 109
      %v660 = vpop.permute.xlu0 %659
      %661 = vrot.lane.b32.xlu0 %v245, 109
      %v662 = vpop.permute.xlu0 %661
      %663 = vrot.lane.b32.xlu0 %v246, 109
      %v664 = vpop.permute.xlu0 %663
      %vm665 = vcmask 891904
      %v666 = vsel %vm665, %v658, %v660
      %v667 = vsel %vm665, %v660, %v662
      %v668 = vsel %vm665, %v662, %v664
      %v673 = vsel %vm262, %v656, 0
      %675 = vmatprep.subr.bf16.mxu0 0
      %676 = vmatpush1.bf16.msra.mxu0 0
      %677 = vmatprep.subr.bf16.mxu0 0
      %678 = vmatpush1.bf16.msra.mxu0 0
      %679 = vmatprep.subr.bf16.mxu0 0
      %680 = vmatpush1.bf16.msra.mxu0 0
      %681 = vmatprep.subr.bf16.mxu0 0
      %682 = vmatpush1.bf16.msra.mxu0 0
      %683 = vmatprep.subr.bf16.mxu0 0
      %684 = vmatpush1.bf16.msra.mxu0 0
      %685 = vmatprep.subr.bf16.mxu0 0
      %686 = vmatpush1.bf16.msra.mxu0 0
      %687 = vmatprep.subr.bf16.mxu0 0
      %688 = vmatpush1.bf16.msra.mxu0 0
      %689 = vmatprep.subr.bf16.mxu0 %v667
      %690 = vmatpush1.bf16.msra.mxu0 %v666
      %691 = vmatprep.subr.bf16.mxu0 0
      %692 = vmatpush2.bf16.msra.mxu0 0
      %693 = vmatprep.subr.bf16.mxu0 0
      %694 = vmatpush2.bf16.msra.mxu0 0
      %695 = vmatprep.subr.bf16.mxu0 0
      %696 = vmatpush2.bf16.msra.mxu0 0
      %697 = vmatprep.subr.bf16.mxu0 0
      %698 = vmatpush2.bf16.msra.mxu0 0
      %699 = vmatprep.subr.bf16.mxu0 0
      %700 = vmatpush2.bf16.msra.mxu0 0
      %701 = vmatprep.subr.bf16.mxu0 0
      %702 = vmatpush2.bf16.msra.mxu0 0
      %703 = vmatprep.subr.bf16.mxu0 0
      %704 = vmatpush2.bf16.msra.mxu0 0
      %705 = vmatprep.subr.bf16.mxu0 0
      %706 = vmatpush2.bf16.msra.mxu0 0
      %707 = vmatprep.mubr.bf16.mxu0 0
      %708 = vmatmul.mubr.bf16.gmra.mxu0 %v673
      %v709 = vpop.f32.mrf.mxu0
      %v710 = vadd.f32 0.0, %v709
      %v711 = vpop.f32.mrf.mxu0
      %v712 = vadd.f32 0.0, %v711
      %v713 = vpop.f32.mrf.mxu0
      %v714 = vpop.f32.mrf.mxu0
      %715 = vdwg.mxu0
      %716 = vmatprep.subr.bf16.mxu0 0
      %717 = vmatpush1.bf16.msra.mxu0 0
      %718 = vmatprep.subr.bf16.mxu0 0
      %719 = vmatpush1.bf16.msra.mxu0 0
      %720 = vmatprep.subr.bf16.mxu0 0
      %721 = vmatpush1.bf16.msra.mxu0 0
      %722 = vmatprep.subr.bf16.mxu0 0
      %723 = vmatpush1.bf16.msra.mxu0 0
      %724 = vmatprep.subr.bf16.mxu0 0
      %725 = vmatpush1.bf16.msra.mxu0 0
      %726 = vmatprep.subr.bf16.mxu0 0
      %727 = vmatpush1.bf16.msra.mxu0 0
      %728 = vmatprep.subr.bf16.mxu0 0
      %729 = vmatpush1.bf16.msra.mxu0 0
      %730 = vmatprep.subr.bf16.mxu0 0
      %731 = vmatpush1.bf16.msra.mxu0 %v668
      %732 = vmatprep.subr.bf16.mxu0 0
      %733 = vmatpush2.bf16.msra.mxu0 0
      %734 = vmatprep.subr.bf16.mxu0 0
      %735 = vmatpush2.bf16.msra.mxu0 0
      %736 = vmatprep.subr.bf16.mxu0 0
      %737 = vmatpush2.bf16.msra.mxu0 0
      %738 = vmatprep.subr.bf16.mxu0 0
      %739 = vmatpush2.bf16.msra.mxu0 0
      %740 = vmatprep.subr.bf16.mxu0 0
      %741 = vmatpush2.bf16.msra.mxu0 0
      %742 = vmatprep.subr.bf16.mxu0 0
      %743 = vmatpush2.bf16.msra.mxu0 0
      %744 = vmatprep.subr.bf16.mxu0 0
      %745 = vmatpush2.bf16.msra.mxu0 0
      %746 = vmatprep.subr.bf16.mxu0 0
      %747 = vmatpush2.bf16.msra.mxu0 0
      %748 = vmatprep.mubr.bf16.mxu0 0
      %749 = vmatmul.mubr.bf16.gmra.mxu0 %v673
      %v750 = vpop.f32.mrf.mxu0
      %v751 = vadd.f32 0.0, %v750
      %v752 = vpop.f32.mrf.mxu0
      %v753 = vpop.f32.mrf.mxu0
      %v754 = vpop.f32.mrf.mxu0
      %755 = vdwg.mxu0
      %v756 = vadd.f32 %v652, %v710
      %v757 = vadd.f32 %v653, %v712
      %v758 = vadd.f32 %v654, %v751
      %s759 = scalar_lea.vmem %s2, 20
      %v760 = vld [vmem:[%s759] sm:$0xf]
      %761 = vrot.lane.b32.xlu0 %v243, 108
      %v762 = vpop.permute.xlu0 %761
      %763 = vrot.lane.b32.xlu0 %v244, 108
      %v764 = vpop.permute.xlu0 %763
      %765 = vrot.lane.b32.xlu0 %v245, 108
      %v766 = vpop.permute.xlu0 %765
      %767 = vrot.lane.b32.xlu0 %v246, 108
      %v768 = vpop.permute.xlu0 %767
      %vm769 = vcmask 883712
      %v770 = vsel %vm769, %v762, %v764
      %v771 = vsel %vm769, %v764, %v766
      %v772 = vsel %vm769, %v766, %v768
      %v777 = vsel %vm262, %v760, 0
      %779 = vmatprep.subr.bf16.mxu0 0
      %780 = vmatpush1.bf16.msra.mxu0 0
      %781 = vmatprep.subr.bf16.mxu0 0
      %782 = vmatpush1.bf16.msra.mxu0 0
      %783 = vmatprep.subr.bf16.mxu0 0
      %784 = vmatpush1.bf16.msra.mxu0 0
      %785 = vmatprep.subr.bf16.mxu0 0
      %786 = vmatpush1.bf16.msra.mxu0 0
      %787 = vmatprep.subr.bf16.mxu0 0
      %788 = vmatpush1.bf16.msra.mxu0 0
      %789 = vmatprep.subr.bf16.mxu0 0
      %790 = vmatpush1.bf16.msra.mxu0 0
      %791 = vmatprep.subr.bf16.mxu0 0
      %792 = vmatpush1.bf16.msra.mxu0 0
      %793 = vmatprep.subr.bf16.mxu0 %v771
      %794 = vmatpush1.bf16.msra.mxu0 %v770
      %795 = vmatprep.subr.bf16.mxu0 0
      %796 = vmatpush2.bf16.msra.mxu0 0
      %797 = vmatprep.subr.bf16.mxu0 0
      %798 = vmatpush2.bf16.msra.mxu0 0
      %799 = vmatprep.subr.bf16.mxu0 0
      %800 = vmatpush2.bf16.msra.mxu0 0
      %801 = vmatprep.subr.bf16.mxu0 0
      %802 = vmatpush2.bf16.msra.mxu0 0
      %803 = vmatprep.subr.bf16.mxu0 0
      %804 = vmatpush2.bf16.msra.mxu0 0
      %805 = vmatprep.subr.bf16.mxu0 0
      %806 = vmatpush2.bf16.msra.mxu0 0
      %807 = vmatprep.subr.bf16.mxu0 0
      %808 = vmatpush2.bf16.msra.mxu0 0
      %809 = vmatprep.subr.bf16.mxu0 0
      %810 = vmatpush2.bf16.msra.mxu0 0
      %811 = vmatprep.mubr.bf16.mxu0 0
      %812 = vmatmul.mubr.bf16.gmra.mxu0 %v777
      %v813 = vpop.f32.mrf.mxu0
      %v814 = vadd.f32 0.0, %v813
      %v815 = vpop.f32.mrf.mxu0
      %v816 = vadd.f32 0.0, %v815
      %v817 = vpop.f32.mrf.mxu0
      %v818 = vpop.f32.mrf.mxu0
      %819 = vdwg.mxu0
      %820 = vmatprep.subr.bf16.mxu0 0
      %821 = vmatpush1.bf16.msra.mxu0 0
      %822 = vmatprep.subr.bf16.mxu0 0
      %823 = vmatpush1.bf16.msra.mxu0 0
      %824 = vmatprep.subr.bf16.mxu0 0
      %825 = vmatpush1.bf16.msra.mxu0 0
      %826 = vmatprep.subr.bf16.mxu0 0
      %827 = vmatpush1.bf16.msra.mxu0 0
      %828 = vmatprep.subr.bf16.mxu0 0
      %829 = vmatpush1.bf16.msra.mxu0 0
      %830 = vmatprep.subr.bf16.mxu0 0
      %831 = vmatpush1.bf16.msra.mxu0 0
      %832 = vmatprep.subr.bf16.mxu0 0
      %833 = vmatpush1.bf16.msra.mxu0 0
      %834 = vmatprep.subr.bf16.mxu0 0
      %835 = vmatpush1.bf16.msra.mxu0 %v772
      %836 = vmatprep.subr.bf16.mxu0 0
      %837 = vmatpush2.bf16.msra.mxu0 0
      %838 = vmatprep.subr.bf16.mxu0 0
      %839 = vmatpush2.bf16.msra.mxu0 0
      %840 = vmatprep.subr.bf16.mxu0 0
      %841 = vmatpush2.bf16.msra.mxu0 0
      %842 = vmatprep.subr.bf16.mxu0 0
      %843 = vmatpush2.bf16.msra.mxu0 0
      %844 = vmatprep.subr.bf16.mxu0 0
      %845 = vmatpush2.bf16.msra.mxu0 0
      %846 = vmatprep.subr.bf16.mxu0 0
      %847 = vmatpush2.bf16.msra.mxu0 0
      %848 = vmatprep.subr.bf16.mxu0 0
      %849 = vmatpush2.bf16.msra.mxu0 0
      %850 = vmatprep.subr.bf16.mxu0 0
      %851 = vmatpush2.bf16.msra.mxu0 0
      %852 = vmatprep.mubr.bf16.mxu0 0
      %853 = vmatmul.mubr.bf16.gmra.mxu0 %v777
      %v854 = vpop.f32.mrf.mxu0
      %v855 = vadd.f32 0.0, %v854
      %v856 = vpop.f32.mrf.mxu0
      %v857 = vpop.f32.mrf.mxu0
      %v858 = vpop.f32.mrf.mxu0
      %859 = vdwg.mxu0
      %v860 = vadd.f32 %v756, %v814
      %v861 = vadd.f32 %v757, %v816
      %v862 = vadd.f32 %v758, %v855
      %s863 = scalar_lea.vmem %s2, 24
      %v864 = vld [vmem:[%s863] sm:$0xf]
      %865 = vrot.lane.b32.xlu0 %v243, 92
      %v866 = vpop.permute.xlu0 %865
      %867 = vrot.lane.b32.xlu0 %v244, 92
      %v868 = vpop.permute.xlu0 %867
      %869 = vrot.lane.b32.xlu0 %v245, 92
      %v870 = vpop.permute.xlu0 %869
      %871 = vrot.lane.b32.xlu0 %v246, 92
      %v872 = vpop.permute.xlu0 %871
      %vm873 = vcmask 752640
      %v874 = vsel %vm873, %v866, %v868
      %v875 = vsel %vm873, %v868, %v870
      %v876 = vsel %vm873, %v870, %v872
      %v881 = vsel %vm262, %v864, 0
      %883 = vmatprep.subr.bf16.mxu0 0
      %884 = vmatpush1.bf16.msra.mxu0 0
      %885 = vmatprep.subr.bf16.mxu0 0
      %886 = vmatpush1.bf16.msra.mxu0 0
      %887 = vmatprep.subr.bf16.mxu0 0
      %888 = vmatpush1.bf16.msra.mxu0 0
      %889 = vmatprep.subr.bf16.mxu0 0
      %890 = vmatpush1.bf16.msra.mxu0 0
      %891 = vmatprep.subr.bf16.mxu0 0
      %892 = vmatpush1.bf16.msra.mxu0 0
      %893 = vmatprep.subr.bf16.mxu0 0
      %894 = vmatpush1.bf16.msra.mxu0 0
      %895 = vmatprep.subr.bf16.mxu0 0
      %896 = vmatpush1.bf16.msra.mxu0 0
      %897 = vmatprep.subr.bf16.mxu0 %v875
      %898 = vmatpush1.bf16.msra.mxu0 %v874
      %899 = vmatprep.subr.bf16.mxu0 0
      %900 = vmatpush2.bf16.msra.mxu0 0
      %901 = vmatprep.subr.bf16.mxu0 0
      %902 = vmatpush2.bf16.msra.mxu0 0
      %903 = vmatprep.subr.bf16.mxu0 0
      %904 = vmatpush2.bf16.msra.mxu0 0
      %905 = vmatprep.subr.bf16.mxu0 0
      %906 = vmatpush2.bf16.msra.mxu0 0
      %907 = vmatprep.subr.bf16.mxu0 0
      %908 = vmatpush2.bf16.msra.mxu0 0
      %909 = vmatprep.subr.bf16.mxu0 0
      %910 = vmatpush2.bf16.msra.mxu0 0
      %911 = vmatprep.subr.bf16.mxu0 0
      %912 = vmatpush2.bf16.msra.mxu0 0
      %913 = vmatprep.subr.bf16.mxu0 0
      %914 = vmatpush2.bf16.msra.mxu0 0
      %915 = vmatprep.mubr.bf16.mxu0 0
      %916 = vmatmul.mubr.bf16.gmra.mxu0 %v881
      %v917 = vpop.f32.mrf.mxu0
      %v918 = vadd.f32 0.0, %v917
      %v919 = vpop.f32.mrf.mxu0
      %v920 = vadd.f32 0.0, %v919
      %v921 = vpop.f32.mrf.mxu0
      %v922 = vpop.f32.mrf.mxu0
      %923 = vdwg.mxu0
      %924 = vmatprep.subr.bf16.mxu0 0
      %925 = vmatpush1.bf16.msra.mxu0 0
      %926 = vmatprep.subr.bf16.mxu0 0
      %927 = vmatpush1.bf16.msra.mxu0 0
      %928 = vmatprep.subr.bf16.mxu0 0
      %929 = vmatpush1.bf16.msra.mxu0 0
      %930 = vmatprep.subr.bf16.mxu0 0
      %931 = vmatpush1.bf16.msra.mxu0 0
      %932 = vmatprep.subr.bf16.mxu0 0
      %933 = vmatpush1.bf16.msra.mxu0 0
      %934 = vmatprep.subr.bf16.mxu0 0
      %935 = vmatpush1.bf16.msra.mxu0 0
      %936 = vmatprep.subr.bf16.mxu0 0
      %937 = vmatpush1.bf16.msra.mxu0 0
      %938 = vmatprep.subr.bf16.mxu0 0
      %939 = vmatpush1.bf16.msra.mxu0 %v876
      %940 = vmatprep.subr.bf16.mxu0 0
      %941 = vmatpush2.bf16.msra.mxu0 0
      %942 = vmatprep.subr.bf16.mxu0 0
      %943 = vmatpush2.bf16.msra.mxu0 0
      %944 = vmatprep.subr.bf16.mxu0 0
      %945 = vmatpush2.bf16.msra.mxu0 0
      %946 = vmatprep.subr.bf16.mxu0 0
      %947 = vmatpush2.bf16.msra.mxu0 0
      %948 = vmatprep.subr.bf16.mxu0 0
      %949 = vmatpush2.bf16.msra.mxu0 0
      %950 = vmatprep.subr.bf16.mxu0 0
      %951 = vmatpush2.bf16.msra.mxu0 0
      %952 = vmatprep.subr.bf16.mxu0 0
      %953 = vmatpush2.bf16.msra.mxu0 0
      %954 = vmatprep.subr.bf16.mxu0 0
      %955 = vmatpush2.bf16.msra.mxu0 0
      %956 = vmatprep.mubr.bf16.mxu0 0
      %957 = vmatmul.mubr.bf16.gmra.mxu0 %v881
      %v958 = vpop.f32.mrf.mxu0
      %v959 = vadd.f32 0.0, %v958
      %v960 = vpop.f32.mrf.mxu0
      %v961 = vpop.f32.mrf.mxu0
      %v962 = vpop.f32.mrf.mxu0
      %963 = vdwg.mxu0
      %v964 = vadd.f32 %v860, %v918
      %v965 = vadd.f32 %v861, %v920
      %v966 = vadd.f32 %v862, %v959
      %s967 = scalar_lea.vmem %s2, 28
      %v968 = vld [vmem:[%s967] sm:$0xf]
      %969 = vrot.lane.b32.xlu0 %v243, 91
      %v970 = vpop.permute.xlu0 %969
      %971 = vrot.lane.b32.xlu0 %v244, 91
      %v972 = vpop.permute.xlu0 %971
      %973 = vrot.lane.b32.xlu0 %v245, 91
      %v974 = vpop.permute.xlu0 %973
      %975 = vrot.lane.b32.xlu0 %v246, 91
      %v976 = vpop.permute.xlu0 %975
      %vm977 = vcmask 744448
      %v978 = vsel %vm977, %v970, %v972
      %v979 = vsel %vm977, %v972, %v974
      %v980 = vsel %vm977, %v974, %v976
      %v985 = vsel %vm262, %v968, 0
      %987 = vmatprep.subr.bf16.mxu0 0
      %988 = vmatpush1.bf16.msra.mxu0 0
      %989 = vmatprep.subr.bf16.mxu0 0
      %990 = vmatpush1.bf16.msra.mxu0 0
      %991 = vmatprep.subr.bf16.mxu0 0
      %992 = vmatpush1.bf16.msra.mxu0 0
      %993 = vmatprep.subr.bf16.mxu0 0
      %994 = vmatpush1.bf16.msra.mxu0 0
      %995 = vmatprep.subr.bf16.mxu0 0
      %996 = vmatpush1.bf16.msra.mxu0 0
      %997 = vmatprep.subr.bf16.mxu0 0
      %998 = vmatpush1.bf16.msra.mxu0 0
      %999 = vmatprep.subr.bf16.mxu0 0
      %1000 = vmatpush1.bf16.msra.mxu0 0
      %1001 = vmatprep.subr.bf16.mxu0 %v979
      %1002 = vmatpush1.bf16.msra.mxu0 %v978
      %1003 = vmatprep.subr.bf16.mxu0 0
      %1004 = vmatpush2.bf16.msra.mxu0 0
      %1005 = vmatprep.subr.bf16.mxu0 0
      %1006 = vmatpush2.bf16.msra.mxu0 0
      %1007 = vmatprep.subr.bf16.mxu0 0
      %1008 = vmatpush2.bf16.msra.mxu0 0
      %1009 = vmatprep.subr.bf16.mxu0 0
      %1010 = vmatpush2.bf16.msra.mxu0 0
      %1011 = vmatprep.subr.bf16.mxu0 0
      %1012 = vmatpush2.bf16.msra.mxu0 0
      %1013 = vmatprep.subr.bf16.mxu0 0
      %1014 = vmatpush2.bf16.msra.mxu0 0
      %1015 = vmatprep.subr.bf16.mxu0 0
      %1016 = vmatpush2.bf16.msra.mxu0 0
      %1017 = vmatprep.subr.bf16.mxu0 0
      %1018 = vmatpush2.bf16.msra.mxu0 0
      %1019 = vmatprep.mubr.bf16.mxu0 0
      %1020 = vmatmul.mubr.bf16.gmra.mxu0 %v985
      %v1021 = vpop.f32.mrf.mxu0
      %v1022 = vadd.f32 0.0, %v1021
      %v1023 = vpop.f32.mrf.mxu0
      %v1024 = vadd.f32 0.0, %v1023
      %v1025 = vpop.f32.mrf.mxu0
      %v1026 = vpop.f32.mrf.mxu0
      %1027 = vdwg.mxu0
      %1028 = vmatprep.subr.bf16.mxu0 0
      %1029 = vmatpush1.bf16.msra.mxu0 0
      %1030 = vmatprep.subr.bf16.mxu0 0
      %1031 = vmatpush1.bf16.msra.mxu0 0
      %1032 = vmatprep.subr.bf16.mxu0 0
      %1033 = vmatpush1.bf16.msra.mxu0 0
      %1034 = vmatprep.subr.bf16.mxu0 0
      %1035 = vmatpush1.bf16.msra.mxu0 0
      %1036 = vmatprep.subr.bf16.mxu0 0
      %1037 = vmatpush1.bf16.msra.mxu0 0
      %1038 = vmatprep.subr.bf16.mxu0 0
      %1039 = vmatpush1.bf16.msra.mxu0 0
      %1040 = vmatprep.subr.bf16.mxu0 0
      %1041 = vmatpush1.bf16.msra.mxu0 0
      %1042 = vmatprep.subr.bf16.mxu0 0
      %1043 = vmatpush1.bf16.msra.mxu0 %v980
      %1044 = vmatprep.subr.bf16.mxu0 0
      %1045 = vmatpush2.bf16.msra.mxu0 0
      %1046 = vmatprep.subr.bf16.mxu0 0
      %1047 = vmatpush2.bf16.msra.mxu0 0
      %1048 = vmatprep.subr.bf16.mxu0 0
      %1049 = vmatpush2.bf16.msra.mxu0 0
      %1050 = vmatprep.subr.bf16.mxu0 0
      %1051 = vmatpush2.bf16.msra.mxu0 0
      %1052 = vmatprep.subr.bf16.mxu0 0
      %1053 = vmatpush2.bf16.msra.mxu0 0
      %1054 = vmatprep.subr.bf16.mxu0 0
      %1055 = vmatpush2.bf16.msra.mxu0 0
      %1056 = vmatprep.subr.bf16.mxu0 0
      %1057 = vmatpush2.bf16.msra.mxu0 0
      %1058 = vmatprep.subr.bf16.mxu0 0
      %1059 = vmatpush2.bf16.msra.mxu0 0
      %1060 = vmatprep.mubr.bf16.mxu0 0
      %1061 = vmatmul.mubr.bf16.gmra.mxu0 %v985
      %v1062 = vpop.f32.mrf.mxu0
      %v1063 = vadd.f32 0.0, %v1062
      %v1064 = vpop.f32.mrf.mxu0
      %v1065 = vpop.f32.mrf.mxu0
      %v1066 = vpop.f32.mrf.mxu0
      %1067 = vdwg.mxu0
      %v1068 = vadd.f32 %v964, %v1022
      %v1069 = vadd.f32 %v965, %v1024
      %v1070 = vadd.f32 %v966, %v1063
      %s1071 = scalar_lea.vmem %s2, 32
      %v1072 = vld [vmem:[%s1071] sm:$0xf]
      %1073 = vrot.lane.b32.xlu0 %v243, 90
      %v1074 = vpop.permute.xlu0 %1073
      %1075 = vrot.lane.b32.xlu0 %v244, 90
      %v1076 = vpop.permute.xlu0 %1075
      %1077 = vrot.lane.b32.xlu0 %v245, 90
      %v1078 = vpop.permute.xlu0 %1077
      %1079 = vrot.lane.b32.xlu0 %v246, 90
      %v1080 = vpop.permute.xlu0 %1079
      %vm1081 = vcmask 736256
      %v1082 = vsel %vm1081, %v1074, %v1076
      %v1083 = vsel %vm1081, %v1076, %v1078
      %v1084 = vsel %vm1081, %v1078, %v1080
      %v1089 = vsel %vm262, %v1072, 0
      %1091 = vmatprep.subr.bf16.mxu0 0
      %1092 = vmatpush1.bf16.msra.mxu0 0
      %1093 = vmatprep.subr.bf16.mxu0 0
      %1094 = vmatpush1.bf16.msra.mxu0 0
      %1095 = vmatprep.subr.bf16.mxu0 0
      %1096 = vmatpush1.bf16.msra.mxu0 0
      %1097 = vmatprep.subr.bf16.mxu0 0
      %1098 = vmatpush1.bf16.msra.mxu0 0
      %1099 = vmatprep.subr.bf16.mxu0 0
      %1100 = vmatpush1.bf16.msra.mxu0 0
      %1101 = vmatprep.subr.bf16.mxu0 0
      %1102 = vmatpush1.bf16.msra.mxu0 0
      %1103 = vmatprep.subr.bf16.mxu0 0
      %1104 = vmatpush1.bf16.msra.mxu0 0
      %1105 = vmatprep.subr.bf16.mxu0 %v1083
      %1106 = vmatpush1.bf16.msra.mxu0 %v1082
      %1107 = vmatprep.subr.bf16.mxu0 0
      %1108 = vmatpush2.bf16.msra.mxu0 0
      %1109 = vmatprep.subr.bf16.mxu0 0
      %1110 = vmatpush2.bf16.msra.mxu0 0
      %1111 = vmatprep.subr.bf16.mxu0 0
      %1112 = vmatpush2.bf16.msra.mxu0 0
      %1113 = vmatprep.subr.bf16.mxu0 0
      %1114 = vmatpush2.bf16.msra.mxu0 0
      %1115 = vmatprep.subr.bf16.mxu0 0
      %1116 = vmatpush2.bf16.msra.mxu0 0
      %1117 = vmatprep.subr.bf16.mxu0 0
      %1118 = vmatpush2.bf16.msra.mxu0 0
      %1119 = vmatprep.subr.bf16.mxu0 0
      %1120 = vmatpush2.bf16.msra.mxu0 0
      %1121 = vmatprep.subr.bf16.mxu0 0
      %1122 = vmatpush2.bf16.msra.mxu0 0
      %1123 = vmatprep.mubr.bf16.mxu0 0
      %1124 = vmatmul.mubr.bf16.gmra.mxu0 %v1089
      %v1125 = vpop.f32.mrf.mxu0
      %v1126 = vadd.f32 0.0, %v1125
      %v1127 = vpop.f32.mrf.mxu0
      %v1128 = vadd.f32 0.0, %v1127
      %v1129 = vpop.f32.mrf.mxu0
      %v1130 = vpop.f32.mrf.mxu0
      %1131 = vdwg.mxu0
      %1132 = vmatprep.subr.bf16.mxu0 0
      %1133 = vmatpush1.bf16.msra.mxu0 0
      %1134 = vmatprep.subr.bf16.mxu0 0
      %1135 = vmatpush1.bf16.msra.mxu0 0
      %1136 = vmatprep.subr.bf16.mxu0 0
      %1137 = vmatpush1.bf16.msra.mxu0 0
      %1138 = vmatprep.subr.bf16.mxu0 0
      %1139 = vmatpush1.bf16.msra.mxu0 0
      %1140 = vmatprep.subr.bf16.mxu0 0
      %1141 = vmatpush1.bf16.msra.mxu0 0
      %1142 = vmatprep.subr.bf16.mxu0 0
      %1143 = vmatpush1.bf16.msra.mxu0 0
      %1144 = vmatprep.subr.bf16.mxu0 0
      %1145 = vmatpush1.bf16.msra.mxu0 0
      %1146 = vmatprep.subr.bf16.mxu0 0
      %1147 = vmatpush1.bf16.msra.mxu0 %v1084
      %1148 = vmatprep.subr.bf16.mxu0 0
      %1149 = vmatpush2.bf16.msra.mxu0 0
      %1150 = vmatprep.subr.bf16.mxu0 0
      %1151 = vmatpush2.bf16.msra.mxu0 0
      %1152 = vmatprep.subr.bf16.mxu0 0
      %1153 = vmatpush2.bf16.msra.mxu0 0
      %1154 = vmatprep.subr.bf16.mxu0 0
      %1155 = vmatpush2.bf16.msra.mxu0 0
      %1156 = vmatprep.subr.bf16.mxu0 0
      %1157 = vmatpush2.bf16.msra.mxu0 0
      %1158 = vmatprep.subr.bf16.mxu0 0
      %1159 = vmatpush2.bf16.msra.mxu0 0
      %1160 = vmatprep.subr.bf16.mxu0 0
      %1161 = vmatpush2.bf16.msra.mxu0 0
      %1162 = vmatprep.subr.bf16.mxu0 0
      %1163 = vmatpush2.bf16.msra.mxu0 0
      %1164 = vmatprep.mubr.bf16.mxu0 0
      %1165 = vmatmul.mubr.bf16.gmra.mxu0 %v1089
      %v1166 = vpop.f32.mrf.mxu0
      %v1167 = vadd.f32 0.0, %v1166
      %v1168 = vpop.f32.mrf.mxu0
      %v1169 = vpop.f32.mrf.mxu0
      %v1170 = vpop.f32.mrf.mxu0
      %1171 = vdwg.mxu0
      %v1172 = vadd.f32 %v1068, %v1126
      %v1173 = vadd.f32 %v1069, %v1128
      %v1174 = vadd.f32 %v1070, %v1167
      %1176 = vset.pattern.permute.xlu0 0
      %1177 = vperm.xlu0 %1176, %v219
      %v1178 = vpop.permute.xlu0 %1177
      %v1180 = vadd.f32 %v1172, %v1178
      %v1181 = vadd.f32 %v1173, %v1178
      %v1182 = vadd.f32 %v1174, %v1178
      %v1183 = vmax.f32 %v1180, 0.0
      %v1184 = vmax.f32 %v1181, 0.0
      %v1185 = vmax.f32 %v1182, 0.0
      %v1186 = vld [vmem:[%s212] sm:$0xff]
      %v1187 = vld [vmem:[%s212 + $0x8] sm:$0xff]
      %v1188 = vld [vmem:[%s212 + $0x10] sm:$0xff]
      %v1189 = vadd.f32 %v1183, %v1186
      %v1190 = vadd.f32 %v1184, %v1187
      %v1191 = vadd.f32 %v1185, %v1188
      %1192 = vst [vmem:[%s217] sm:$0xff] %v1189
      %1193 = vst [vmem:[%s217 + $0x8] sm:$0xff] %v1190
      %1194 = vst [vmem:[%s217 + $0x10] sm:$0xff] %v1191
      %p1195 = scmp.lt.s32.totalorder %s15, 1
      %s1196 = scalar_select %p1195, %s15, 1
      %s1197 = smul.addr %s1196, 3
      %s1198 = smul.addr %s1197, 8
      %s1199 = scalar_lea.vmem %s4, %s1198
      // Predicated region
      $region37: #{harmony_rec_blocks_forward.5} parent=35 // pred_check
        %p1200 = pneg %p127
      $region38: #{harmony_rec_blocks_forward.5} parent=35 // pred_check_branch
        %1202 = sbr.rel (%p1200) target = $region40
      $region39: #{harmony_rec_blocks_forward.5} parent=35 // pred_region
        _
      $region40: #{harmony_rec_blocks_forward.5} parent=35 // pred_fallthru
        _
    $region36: #{harmony_rec_blocks_forward.5} parent=5 // pred_fallthru
      _
    %p1203 = scmp.le.s32.totalorder 2, %s10
    // Predicated region
    $region41: #{harmony_rec_blocks_forward.5} parent=5 // pred_check
      %p1204 = pneg %p1203
    $region42: #{harmony_rec_blocks_forward.5} parent=5 // pred_check_branch
      %1206 = sbr.rel (%p1204) target = $region44
    $region43: #{harmony_rec_blocks_forward.5} parent=5 // pred_region
      %s1207 = ssub.s32 %s10, 2
      // Predicated region
      $region45: #{harmony_rec_blocks_forward.5} parent=43 // pred_check
        %p1208 = pneg %p133
      $region46: #{harmony_rec_blocks_forward.5} parent=43 // pred_check_branch
        %1210 = sbr.rel (%p1208) target = $region48
      $region47: #{harmony_rec_blocks_forward.5} parent=43 // pred_region
        %p1211 = scmp.lt.s32.totalorder %s16, 1
        %s1212 = scalar_select %p1211, %s16, 1
        %s1213 = smul.addr %s1212, 3
        %s1214 = smul.addr %s1213, 8
        %s1215 = scalar_lea.vmem %s4, %s1214
      $region48: #{harmony_rec_blocks_forward.5} parent=43 // pred_fallthru
        _
    $region44: #{harmony_rec_blocks_forward.5} parent=5 // pred_fallthru
      _
  $region6: #{harmony_rec_blocks_forward.5} parent=0 // loop_footer
    %s14 = sadd.s32 1, %s10
  $region7: #{harmony_rec_blocks_forward.5} parent=0 // loop_footer_branch
    %9 = sbr.rel target = $region3
  $region8: #{harmony_rec_blocks_forward.5} parent=0 // loop_exit
    _

</llo_original>
